<compile_context>
chip_gen: v7x
topology: tpu7x:2x2x1
jax: 0.10.0
libtpu: 0.0.40
codegen_flags: <defaults>
</compile_context>

<pallas_src>
import jax
import jax.numpy as jnp
from jax import lax
from jax.experimental import pallas as pl
from jax.experimental.pallas import tpu as pltpu


def _cdiv(a, b):
    return -(-a // b)


def _round_up(x, m):
    return (x + m - 1) // m * m


def _vmem_capacity_bytes():
    """Per-core VMEM capacity; conservative v7x value if detection fails."""
    try:
        cap = getattr(pltpu.get_tpu_info(), "vmem_capacity_bytes", None)
        if cap:
            return int(cap)
    except Exception:
        pass
    return 64 << 20  # v7x per-TensorCore VMEM (smallest of v5e/v6e/v7x)


def _choose_batch_tile(B, zsa_dim, itemsize, *, tile_budget_bytes=4 << 20,
                       max_tb=8192):
    """Rows per grid step: ~4 MiB of x per tile, 128-aligned, >=4 grid steps."""
    tb = (tile_budget_bytes // max(zsa_dim * itemsize, 1)) // 128 * 128
    tb = int(max(128, min(tb, max_tb)))
    tb = min(tb, _round_up(B, 128))
    # v7x megacore: keep >= 4 grid steps when the batch permits so both
    # TensorCores get work and each still has >= 2 steps to pipeline its x DMA.
    tb = min(tb, max(128, _round_up(_cdiv(B, 4), 128)))
    return tb


def _choose_vmem_limit(tb, zsa_dim, hdim, in_itemsize, out_itemsize):
    """vmem_limit_bytes from actual usage + headroom, capped below physical."""
    need = (2 * tb * zsa_dim * in_itemsize      # x tile, double-buffered
            + zsa_dim * hdim * in_itemsize      # w1, single-buffered resident
            + 2 * hdim * in_itemsize            # b1 + w2 rows
            + tb * hdim * 4                     # f32 (tb, hdim) intermediate h
            + 2 * tb * out_itemsize)            # output block, double-buffered
    cap = _vmem_capacity_bytes() * 3 // 4       # headroom below physical VMEM
    return int(min(max(2 * need + (4 << 20), 16 << 20), cap))


def _vhead_kernel(x_ref, w1_ref, b1_ref, w2_ref, b2_ref, o_ref):
    # x_ref : (TB, zsa_dim)   VMEM  one batch tile (bf16)
    # w1_ref: (zsa_dim, hdim) VMEM  resident across grid steps (single buffer)
    # b1_ref: (1, hdim)       VMEM  resident
    # w2_ref: (1, hdim)       VMEM  resident (second linear kept as a row)
    # b2_ref: (1, 1)          SMEM  f32 scalar
    # o_ref : (1, TB)         VMEM  lane-dense output (batch along lanes)
    #
    # Linear 1 on the MXU (bf16 inputs, f32 accumulation); bias + ReLU on VPU.
    h = jnp.dot(x_ref[...], w1_ref[...], preferred_element_type=jnp.float32)
    h = jnp.maximum(h + b1_ref[...].astype(jnp.float32), 0.0)       # (TB, hdim)
    # Linear 2 has a single output column: VPU multiply + XLU lane reduction.
    # TODO(synk): if a bundle dump shows VALU/XLU saturating, switch this to
    # jnp.dot(h, w2.T, preferred_element_type=f32) with a (TB, 1) output block.
    v = jnp.sum(h * w2_ref[...].astype(jnp.float32), axis=-1) + b2_ref[0, 0]
    # Lane-dense store: batch laid out along the 128-lane axis of the block.
    o_ref[...] = v[None, :].astype(o_ref.dtype)


def vhead_forward(x, w1, b1, w2, b2):
    """Fused VHead forward: squeeze(relu(x @ w1 + b1) @ w2.T + b2).

    x : (B, zsa_dim) (bf16 recommended); w1: (zsa_dim, hdim); b1: (1, hdim);
    w2: (1, hdim); b2: (1, 1) float32.
    Returns shape (B,) (a scalar when B == 1), matching torch's .squeeze().
    """
    squeeze_all = x.ndim == 1
    if squeeze_all:
        x = x[None, :]
    B, zsa_dim = x.shape
    hdim = w1.shape[1]
    out_dtype = x.dtype
    in_itemsize = jnp.dtype(x.dtype).itemsize
    out_itemsize = jnp.dtype(out_dtype).itemsize

    tb = _choose_batch_tile(B, zsa_dim, in_itemsize)
    grid = (_cdiv(B, tb),)  # no padding pass: tail tile is partial / masked
    vmem_limit = _choose_vmem_limit(tb, zsa_dim, hdim, in_itemsize, out_itemsize)

    cost = pl.CostEstimate(
        flops=2 * B * zsa_dim * hdim + 4 * B * hdim,
        transcendentals=0,
        bytes_accessed=(x.size * in_itemsize
                        + w1.size * jnp.dtype(w1.dtype).itemsize
                        + b1.size * jnp.dtype(b1.dtype).itemsize
                        + w2.size * jnp.dtype(w2.dtype).itemsize
                        + b2.size * jnp.dtype(b2.dtype).itemsize
                        + B * out_itemsize),
    )

    def build(single_buffer_weights):
        resident = (dict(pipeline_mode=pl.Buffered(1))
                    if single_buffer_weights else {})
        return pl.pallas_call(
            _vhead_kernel,
            out_shape=jax.ShapeDtypeStruct((1, B), out_dtype),
            grid_spec=pltpu.PrefetchScalarGridSpec(
                num_scalar_prefetch=0,
                grid=grid,
                in_specs=[
                    # x tile: the only recurring large DMA; default (2-deep)
                    # pipelining.  TODO(synk): sweep pl.Buffered(3) here if the
                    # x DMA shows up exposed at large zsa_dim.
                    pl.BlockSpec((tb, zsa_dim), lambda i: (i, 0)),
                    pl.BlockSpec((zsa_dim, hdim), lambda i: (0, 0), **resident),
                    pl.BlockSpec((1, hdim), lambda i: (0, 0), **resident),
                    pl.BlockSpec((1, hdim), lambda i: (0, 0), **resident),
                    pl.BlockSpec(memory_space=pltpu.MemorySpace.SMEM),  # b2
                ],
                out_specs=pl.BlockSpec((1, tb), lambda i: (0, i)),  # lane-dense
            ),
            compiler_params=pltpu.CompilerParams(
                dimension_semantics=("parallel",),   # megacore-sharded batch
                vmem_limit_bytes=vmem_limit,
            ),
            cost_estimate=cost,
        )

    try:
        out = build(True)(x, w1, b1, w2, b2)
    except Exception:
        # Fallback for jax versions without BlockSpec pipeline_mode support.
        out = build(False)(x, w1, b1, w2, b2)

    v = out[0, :B]
    return jnp.squeeze(v) if (squeeze_all or B == 1) else v


def init_vhead_params(key, zsa_dim, hdim, dtype=jnp.bfloat16):
    """Xavier-normal weights, zero biases (mirrors VHead._init_weights).

    Weights are stored in bf16 (halves HBM traffic / resident VMEM, bf16 MXU
    rate); b2 stays f32 since it lives in SMEM and is applied in the f32
    epilogue.  W1 is pre-transposed to (zsa_dim, hdim); W2 is the (1, hdim) row.
    """
    k1, k2 = jax.random.split(key)
    std1 = (2.0 / (zsa_dim + hdim)) ** 0.5
    std2 = (2.0 / (hdim + 1)) ** 0.5
    w1 = (std1 * jax.random.normal(k1, (zsa_dim, hdim), jnp.float32)).astype(dtype)
    b1 = jnp.zeros((1, hdim), dtype)
    w2 = (std2 * jax.random.normal(k2, (1, hdim), jnp.float32)).astype(dtype)
    b2 = jnp.zeros((1, 1), jnp.float32)
    return w1, b1, w2, b2


if __name__ == "__main__":
    key = jax.random.PRNGKey(0)
    k_x, k_x2, k_p, k_b = jax.random.split(key, 4)

    zsa_dim, hdim = 32, 32
    w1, b1, w2, b2 = init_vhead_params(k_p, zsa_dim, hdim)
    # Non-zero biases purely so the test exercises the bias path.
    b1 = (0.1 * jax.random.normal(k_b, (1, hdim), jnp.float32)).astype(w1.dtype)
    b2 = jnp.array([[0.05]], jnp.float32)

    def reference(x):
        xf = x.astype(jnp.float32)
        hf = jnp.maximum(
            jnp.dot(xf, w1.astype(jnp.float32),
                    precision=lax.Precision.HIGHEST)
            + b1.astype(jnp.float32), 0.0)
        return jnp.squeeze(jnp.sum(hf * w2.astype(jnp.float32), axis=-1) + b2[0, 0])

    # bf16 inputs + bf16 output quantization -> loosened tolerances.
    tol = dict(atol=3e-2, rtol=3e-2)

    # Small batch: single partial 128-row tile, no padding pass over x.
    x_small = jax.random.normal(k_x, (8, zsa_dim), jnp.float32).astype(jnp.bfloat16)
    v_small = vhead_forward(x_small, w1, b1, w2, b2)
    jax.block_until_ready(v_small)
    assert v_small.shape == (8,), v_small.shape
    assert jnp.allclose(v_small.astype(jnp.float32), reference(x_small), **tol)

    # Batch exercising several grid steps plus a partial tail tile.
    x_big = jax.random.normal(k_x2, (260, zsa_dim), jnp.float32).astype(jnp.bfloat16)
    v_big = vhead_forward(x_big, w1, b1, w2, b2)
    jax.block_until_ready(v_big)
    assert v_big.shape == (260,), v_big.shape
    assert jnp.allclose(v_big.astype(jnp.float32), reference(x_big), **tol)

    print("KERNEL_OK")
</pallas_src>

<mosaic_0001>
module attributes {stable_mosaic.version = 11 : i64} {
  func.func @_vhead_kernel(%arg0: i32, %arg1: memref<128x32xbf16, #tpu.memory_space<vmem>>, %arg2: memref<32x32xbf16, #tpu.memory_space<vmem>>, %arg3: memref<1x32xbf16, #tpu.memory_space<vmem>>, %arg4: memref<1x32xbf16, #tpu.memory_space<vmem>>, %arg5: memref<1x1xf32, #tpu.memory_space<smem>>, %arg6: memref<1x128xbf16, #tpu.memory_space<vmem>>) attributes {dimension_semantics = [#tpu.dimension_semantics<parallel>], iteration_bounds = array<i64: 1>, scalar_prefetch = 0 : i64, scratch_operands = 0 : i64, tpu.core_type = #tpu.core_type<tc>, window_params = [{transform_indices = @transform_0, window_bounds = array<i64: 128, 32>}, {pipeline_mode = #tpu.pipeline_mode<synchronous>, transform_indices = @transform_1, window_bounds = array<i64: 32, 32>}, {pipeline_mode = #tpu.pipeline_mode<synchronous>, transform_indices = @transform_2, window_bounds = array<i64: 1, 32>}, {pipeline_mode = #tpu.pipeline_mode<synchronous>, transform_indices = @transform_3, window_bounds = array<i64: 1, 32>}, {transform_indices = @transform_4, window_bounds = array<i64: 1, 1>}, {transform_indices = @transform_5, window_bounds = array<i64: 1, 128>}]} {
    %c0 = arith.constant 0 : index
    %c0_0 = arith.constant 0 : index
    %0 = vector.load %arg1[%c0, %c0_0] : memref<128x32xbf16, #tpu.memory_space<vmem>>, vector<128x32xbf16>
    %c0_1 = arith.constant 0 : index
    %c0_2 = arith.constant 0 : index
    %1 = vector.load %arg2[%c0_1, %c0_2] : memref<32x32xbf16, #tpu.memory_space<vmem>>, vector<32x32xbf16>
    %cst = arith.constant dense<0.000000e+00> : vector<128x32xf32>
    %2 = tpu.matmul %0, %1, %cst {dimension_numbers = #tpu.dot_dimension_numbers<[1], [0], [0], [1], [0, 0, 1, 1], [], []>} : vector<128x32xbf16>, vector<32x32xbf16>, vector<128x32xf32> -> vector<128x32xf32>
    %c0_3 = arith.constant 0 : index
    %c0_4 = arith.constant 0 : index
    %3 = vector.load %arg3[%c0_3, %c0_4] : memref<1x32xbf16, #tpu.memory_space<vmem>>, vector<1x32xbf16>
    %4 = arith.extf %3 : vector<1x32xbf16> to vector<1x32xf32>
    %5 = vector.broadcast %4 : vector<1x32xf32> to vector<128x32xf32>
    %6 = arith.addf %2, %5 : vector<128x32xf32>
    %cst_5 = arith.constant 0.000000e+00 : f32
    %7 = vector.broadcast %cst_5 : f32 to vector<128x32xf32>
    %8 = arith.maximumf %6, %7 : vector<128x32xf32>
    %c0_6 = arith.constant 0 : index
    %c0_7 = arith.constant 0 : index
    %9 = vector.load %arg4[%c0_6, %c0_7] : memref<1x32xbf16, #tpu.memory_space<vmem>>, vector<1x32xbf16>
    %10 = arith.extf %9 : vector<1x32xbf16> to vector<1x32xf32>
    %11 = vector.broadcast %10 : vector<1x32xf32> to vector<128x32xf32>
    %12 = arith.mulf %8, %11 : vector<128x32xf32>
    %cst_8 = arith.constant dense<0.000000e+00> : vector<128xf32>
    %13 = vector.multi_reduction <add>, %12, %cst_8 [1] : vector<128x32xf32> to vector<128xf32>
    %c0_9 = arith.constant 0 : index
    %c0_10 = arith.constant 0 : index
    %14 = memref.load %arg5[%c0_9, %c0_10] : memref<1x1xf32, #tpu.memory_space<smem>>
    %15 = vector.broadcast %14 : f32 to vector<128xf32>
    %16 = arith.addf %13, %15 : vector<128xf32>
    %17 = vector.shape_cast %16 : vector<128xf32> to vector<1x128xf32>
    %18 = arith.truncf %17 : vector<1x128xf32> to vector<1x128xbf16>
    %c0_11 = arith.constant 0 : index
    %c0_12 = arith.constant 0 : index
    %19 = vector.load %arg6[%c0_11, %c0_12] : memref<1x128xbf16, #tpu.memory_space<vmem>>, vector<1x128xbf16>
    tpu.vector_store %arg6[%c0_11, %c0_12], %18 {strides = array<i32>} : memref<1x128xbf16, #tpu.memory_space<vmem>>, vector<1x128xbf16>,
    return
  }
  func.func @transform_0(%arg0: i32) -> (i32, i32) {
    %c0_i32 = arith.constant 0 : i32
    %c0_i32_0 = arith.constant 0 : i32
    return %arg0, %c0_i32 : i32, i32
  }
  func.func @transform_1(%arg0: i32) -> (i32, i32) {
    %c0_i32 = arith.constant 0 : i32
    %c0_i32_0 = arith.constant 0 : i32
    %c0_i32_1 = arith.constant 0 : i32
    return %c0_i32, %c0_i32_0 : i32, i32
  }
  func.func @transform_2(%arg0: i32) -> (i32, i32) {
    %c0_i32 = arith.constant 0 : i32
    %c0_i32_0 = arith.constant 0 : i32
    %c0_i32_1 = arith.constant 0 : i32
    return %c0_i32, %c0_i32_0 : i32, i32
  }
  func.func @transform_3(%arg0: i32) -> (i32, i32) {
    %c0_i32 = arith.constant 0 : i32
    %c0_i32_0 = arith.constant 0 : i32
    %c0_i32_1 = arith.constant 0 : i32
    return %c0_i32, %c0_i32_0 : i32, i32
  }
  func.func @transform_4(%arg0: i32) -> (i32, i32) {
    %c0_i32 = arith.constant 0 : i32
    %c0_i32_0 = arith.constant 0 : i32
    %c0_i32_1 = arith.constant 0 : i32
    return %c0_i32, %c0_i32_0 : i32, i32
  }
  func.func @transform_5(%arg0: i32) -> (i32, i32) {
    %c0_i32 = arith.constant 0 : i32
    %c0_i32_0 = arith.constant 0 : i32
    return %c0_i32, %arg0 : i32, i32
  }
}

module attributes {stable_mosaic.version = 11 : i64} {
  func.func @_vhead_kernel(%arg0: i32, %arg1: memref<128x32xbf16, #tpu.memory_space<vmem>>, %arg2: memref<32x32xbf16, #tpu.memory_space<vmem>>, %arg3: memref<1x32xbf16, #tpu.memory_space<vmem>>, %arg4: memref<1x32xbf16, #tpu.memory_space<vmem>>, %arg5: memref<1x1xf32, #tpu.memory_space<smem>>, %arg6: memref<1x128xbf16, #tpu.memory_space<vmem>>) attributes {dimension_semantics = [#tpu.dimension_semantics<parallel>], iteration_bounds = array<i64: 1>, scalar_prefetch = 0 : i64, scratch_operands = 0 : i64, tpu.core_type = #tpu.core_type<tc>, window_params = [{transform_indices = @transform_0, window_bounds = array<i64: 128, 32>}, {pipeline_mode = #tpu.pipeline_mode<synchronous>, transform_indices = @transform_1, window_bounds = array<i64: 32, 32>}, {pipeline_mode = #tpu.pipeline_mode<synchronous>, transform_indices = @transform_2, window_bounds = array<i64: 1, 32>}, {pipeline_mode = #tpu.pipeline_mode<synchronous>, transform_indices = @transform_3, window_bounds = array<i64: 1, 32>}, {transform_indices = @transform_4, window_bounds = array<i64: 1, 1>}, {transform_indices = @transform_5, window_bounds = array<i64: 1, 128>}]} {
    %c0 = arith.constant 0 : index
    %c0_0 = arith.constant 0 : index
    %0 = vector.load %arg1[%c0, %c0_0] : memref<128x32xbf16, #tpu.memory_space<vmem>>, vector<128x32xbf16>
    %c0_1 = arith.constant 0 : index
    %c0_2 = arith.constant 0 : index
    %1 = vector.load %arg2[%c0_1, %c0_2] : memref<32x32xbf16, #tpu.memory_space<vmem>>, vector<32x32xbf16>
    %cst = arith.constant dense<0.000000e+00> : vector<128x32xf32>
    %2 = tpu.matmul %0, %1, %cst {dimension_numbers = #tpu.dot_dimension_numbers<[1], [0], [0], [1], [0, 0, 1, 1], [], []>} : vector<128x32xbf16>, vector<32x32xbf16>, vector<128x32xf32> -> vector<128x32xf32>
    %c0_3 = arith.constant 0 : index
    %c0_4 = arith.constant 0 : index
    %3 = vector.load %arg3[%c0_3, %c0_4] : memref<1x32xbf16, #tpu.memory_space<vmem>>, vector<1x32xbf16>
    %4 = arith.extf %3 : vector<1x32xbf16> to vector<1x32xf32>
    %5 = vector.broadcast %4 : vector<1x32xf32> to vector<128x32xf32>
    %6 = arith.addf %2, %5 : vector<128x32xf32>
    %cst_5 = arith.constant 0.000000e+00 : f32
    %7 = vector.broadcast %cst_5 : f32 to vector<128x32xf32>
    %8 = arith.maximumf %6, %7 : vector<128x32xf32>
    %c0_6 = arith.constant 0 : index
    %c0_7 = arith.constant 0 : index
    %9 = vector.load %arg4[%c0_6, %c0_7] : memref<1x32xbf16, #tpu.memory_space<vmem>>, vector<1x32xbf16>
    %10 = arith.extf %9 : vector<1x32xbf16> to vector<1x32xf32>
    %11 = vector.broadcast %10 : vector<1x32xf32> to vector<128x32xf32>
    %12 = arith.mulf %8, %11 : vector<128x32xf32>
    %cst_8 = arith.constant dense<0.000000e+00> : vector<128xf32>
    %13 = vector.multi_reduction <add>, %12, %cst_8 [1] : vector<128x32xf32> to vector<128xf32>
    %c0_9 = arith.constant 0 : index
    %c0_10 = arith.constant 0 : index
    %14 = memref.load %arg5[%c0_9, %c0_10] : memref<1x1xf32, #tpu.memory_space<smem>>
    %15 = vector.broadcast %14 : f32 to vector<128xf32>
    %16 = arith.addf %13, %15 : vector<128xf32>
    %17 = vector.shape_cast %16 : vector<128xf32> to vector<1x128xf32>
    %18 = arith.truncf %17 : vector<1x128xf32> to vector<1x128xbf16>
    %c0_11 = arith.constant 0 : index
    %c0_12 = arith.constant 0 : index
    %19 = vector.load %arg6[%c0_11, %c0_12] : memref<1x128xbf16, #tpu.memory_space<vmem>>, vector<1x128xbf16>
    tpu.vector_store %arg6[%c0_11, %c0_12], %18 {strides = array<i32>} : memref<1x128xbf16, #tpu.memory_space<vmem>>, vector<1x128xbf16>,
    return
  }
  func.func @transform_0(%arg0: i32) -> (i32, i32) {
    %c0_i32 = arith.constant 0 : i32
    %c0_i32_0 = arith.constant 0 : i32
    return %arg0, %c0_i32 : i32, i32
  }
  func.func @transform_1(%arg0: i32) -> (i32, i32) {
    %c0_i32 = arith.constant 0 : i32
    %c0_i32_0 = arith.constant 0 : i32
    %c0_i32_1 = arith.constant 0 : i32
    return %c0_i32, %c0_i32_0 : i32, i32
  }
  func.func @transform_2(%arg0: i32) -> (i32, i32) {
    %c0_i32 = arith.constant 0 : i32
    %c0_i32_0 = arith.constant 0 : i32
    %c0_i32_1 = arith.constant 0 : i32
    return %c0_i32, %c0_i32_0 : i32, i32
  }
  func.func @transform_3(%arg0: i32) -> (i32, i32) {
    %c0_i32 = arith.constant 0 : i32
    %c0_i32_0 = arith.constant 0 : i32
    %c0_i32_1 = arith.constant 0 : i32
    return %c0_i32, %c0_i32_0 : i32, i32
  }
  func.func @transform_4(%arg0: i32) -> (i32, i32) {
    %c0_i32 = arith.constant 0 : i32
    %c0_i32_0 = arith.constant 0 : i32
    %c0_i32_1 = arith.constant 0 : i32
    return %c0_i32, %c0_i32_0 : i32, i32
  }
  func.func @transform_5(%arg0: i32) -> (i32, i32) {
    %c0_i32 = arith.constant 0 : i32
    %c0_i32_0 = arith.constant 0 : i32
    return %c0_i32, %arg0 : i32, i32
  }
}

</mosaic_0001>

<llo_original>
// kernel: tpu_custom_call.1
$region0: #{tpu_custom_call.1}
  #allocation0 [shape = 'u32[]', space=smem, size = 0x4, offset = 0x4, fixed_abs, tag = 'smem constant byte address 0x4 - core index']
  #allocation1 [shape = 'u32[144,128]{1,0:T(1,128)}', space=vmem, size = 0x12000, scoped, tag = 'internal scratch']
  #allocation2 [shape = 'f32[1,1]{1,0:T(1,128)S(6)}', space=smem, size = 0x200, scoped, tag = 'scoped memory for tpu_custom_call.1']
  %s0 = inlined_call_operand.hbm [shape: bf16[8,32], index: 0, kind: input, shape index: {}]
  %s1 = inlined_call_operand.hbm [shape: bf16[32,32], index: 1, kind: input, shape index: {}]
  %s2 = inlined_call_operand.vmem [shape: bf16[1,32], index: 2, kind: input, shape index: {}]
  %s3 = inlined_call_operand.vmem [shape: bf16[1,32], index: 3, kind: input, shape index: {}]
  %s4 = inlined_call_operand.<no memory space> [shape: f32[1,1], index: 4, kind: input, shape index: {}]
  %s5 = inlined_call_operand.hbm [shape: bf16[1,8], index: 5, kind: output, shape index: {}]
  %s6 = sld [smem:[#allocation0]]
  $region38: #{tpu_custom_call.1} parent=0
    _
  %s8 = ssub.s32 1, %s6
  %s9 = scalar_select 0, %s8, %s6
  %10 = sst [smem:[#allocation2]] %s4
  $region1: #{tpu_custom_call.1} parent=0
    #allocation3 [shape = 'u8[32768]{0}', space=vmem, size = 0x8000, scoped, tag = 'input window, operand 0, single buffered']
    #allocation4 [shape = 's32[1]{0}', space=sflag, size = 0x4, scoped, tag = 'scoped memory for tpu_custom_call.1']
    #allocation5 [shape = 's32[1]{0}', space=sflag, size = 0x4, scoped, tag = 'scoped memory for tpu_custom_call.1']
    #allocation6 [shape = 'u8[8192]{0}', space=vmem, size = 0x2000, scoped, tag = 'input window, operand 1, single buffered']
    #allocation7 [shape = 's32[1]{0}', space=sflag, size = 0x4, scoped, tag = 'scoped memory for tpu_custom_call.1']
    #allocation8 [shape = 'u8[512]{0}', space=vmem, size = 0x400, scoped, tag = 'output window, operand 0, single buffered']
    %11 = vsyncpa [#allocation4], 0
    %12 = vsyncpa [#allocation7], 0
    %13 = vsyncpa [#allocation5], 0
    // Predicated region
    $region2: #{tpu_custom_call.1} parent=1 // pred_check
      _
    $region3: #{tpu_custom_call.1} parent=1 // pred_check_branch
      %15 = sbr.rel (0) target = $region5
    $region4: #{tpu_custom_call.1} parent=1 // pred_region
      %s17 = ssub.s32 1024, 64
      %18 = vsyncadd [#allocation4], %s17
      %s19 = sshll.u32 [#allocation3], 4
      %s20 = int_to_ptr.vmem [resolvable:$true] %s19
      %25 = dma.hbm_to_vmem [thread:$0]  %s0, 64, %s20, [#allocation4], 64, 64, 4
    $region5: #{tpu_custom_call.1} parent=1 // pred_fallthru
      _
    // Predicated region
    $region6: #{tpu_custom_call.1} parent=1 // pred_check
      _
    $region7: #{tpu_custom_call.1} parent=1 // pred_check_branch
      %27 = sbr.rel (0) target = $region9
    $region8: #{tpu_custom_call.1} parent=1 // pred_region
      %s29 = ssub.s32 256, 256
      %30 = vsyncadd [#allocation7], %s29
      %s31 = sshll.u32 [#allocation6], 4
      %s32 = int_to_ptr.vmem [resolvable:$true] %s31
      %37 = dma.hbm_to_vmem [thread:$0]  %s1, 256, %s32, [#allocation7], 64, 64, 4
    $region9: #{tpu_custom_call.1} parent=1 // pred_fallthru
      _
    // Predicated region
    $region10: #{tpu_custom_call.1} parent=1 // pred_check
      _
    $region11: #{tpu_custom_call.1} parent=1 // pred_check_branch
      %39 = sbr.rel (0) target = $region13
    $region12: #{tpu_custom_call.1} parent=1 // pred_region
      _
    $region13: #{tpu_custom_call.1} parent=1 // pred_fallthru
      _
    // Predicated region
    $region14: #{tpu_custom_call.1} parent=1 // pred_check
      _
    $region15: #{tpu_custom_call.1} parent=1 // pred_check_branch
      %41 = sbr.rel (0) target = $region17
    $region16: #{tpu_custom_call.1} parent=1 // pred_region
      _
    $region17: #{tpu_custom_call.1} parent=1 // pred_fallthru
      _
    // Predicated region
    $region18: #{tpu_custom_call.1} parent=1 // pred_check
      _
    $region19: #{tpu_custom_call.1} parent=1 // pred_check_branch
      %43 = sbr.rel (0) target = $region21
    $region20: #{tpu_custom_call.1} parent=1 // pred_region
      _
    $region21: #{tpu_custom_call.1} parent=1 // pred_fallthru
      _
    // Predicated region
    $region22: #{tpu_custom_call.1} parent=1 // pred_check
      _
    $region23: #{tpu_custom_call.1} parent=1 // pred_check_branch
      %45 = sbr.rel (0) target = $region25
    $region24: #{tpu_custom_call.1} parent=1 // pred_region
      %46 = dma.done [#allocation4], 1024
    $region25: #{tpu_custom_call.1} parent=1 // pred_fallthru
      _
    // Predicated region
    $region26: #{tpu_custom_call.1} parent=1 // pred_check
      _
    $region27: #{tpu_custom_call.1} parent=1 // pred_check_branch
      %48 = sbr.rel (0) target = $region29
    $region28: #{tpu_custom_call.1} parent=1 // pred_region
      %49 = dma.done [#allocation7], 256
    $region29: #{tpu_custom_call.1} parent=1 // pred_fallthru
      _
    %v51 = vld [vmem:[#allocation3] sm:$0xf]
    %v52 = vld [vmem:[#allocation3 + $0x4] sm:$0xf]
    %v53 = vld [vmem:[#allocation3 + $0x8] sm:$0xf]
    %v54 = vld [vmem:[#allocation3 + $0xc] sm:$0xf]
    %v55 = vld [vmem:[#allocation3 + $0x10] sm:$0xf]
    %v56 = vld [vmem:[#allocation3 + $0x14] sm:$0xf]
    %v57 = vld [vmem:[#allocation3 + $0x18] sm:$0xf]
    %v58 = vld [vmem:[#allocation3 + $0x1c] sm:$0xf]
    %v59 = vld [vmem:[#allocation3 + $0x20] sm:$0xf]
    %v60 = vld [vmem:[#allocation3 + $0x24] sm:$0xf]
    %v61 = vld [vmem:[#allocation3 + $0x28] sm:$0xf]
    %v62 = vld [vmem:[#allocation3 + $0x2c] sm:$0xf]
    %v63 = vld [vmem:[#allocation3 + $0x30] sm:$0xf]
    %v64 = vld [vmem:[#allocation3 + $0x34] sm:$0xf]
    %v65 = vld [vmem:[#allocation3 + $0x38] sm:$0xf]
    %v66 = vld [vmem:[#allocation3 + $0x3c] sm:$0xf]
    %v67 = vld [vmem:[#allocation6] sm:$0xf]
    %v68 = vld [vmem:[#allocation6 + $0x4] sm:$0xf]
    %v69 = vld [vmem:[#allocation6 + $0x8] sm:$0xf]
    %v70 = vld [vmem:[#allocation6 + $0xc] sm:$0xf]
    %v71 = vld [vmem:[%s2] sm:$0x1]
    %v72 = vunpack.c.l.bf16 %v71
    %v73 = vlaneseq
    %v74 = vshrl.u32 %v73, 7
    %v75 = vsub.s32 0, %v74
    %v76 = vrot.slane %v72, %v75
    %v93 = vunpack.c.l.b16 %v51
    %v94 = vunpack.c.l.b16 %v52
    %v95 = vunpack.c.l.b16 %v53
    %v96 = vunpack.c.l.b16 %v54
    %v97 = vunpack.c.l.b16 %v55
    %v98 = vunpack.c.l.b16 %v56
    %v99 = vunpack.c.l.b16 %v57
    %v100 = vunpack.c.l.b16 %v58
    %v101 = vunpack.c.l.b16 %v59
    %v102 = vunpack.c.l.b16 %v60
    %v103 = vunpack.c.l.b16 %v61
    %v104 = vunpack.c.l.b16 %v62
    %v105 = vunpack.c.l.b16 %v63
    %v106 = vunpack.c.l.b16 %v64
    %v107 = vunpack.c.l.b16 %v65
    %v108 = vunpack.c.l.b16 %v66
    %v109 = vpack.c.b16 %v94, %v93
    %v110 = vpack.c.b16 %v96, %v95
    %v111 = vpack.c.b16 %v98, %v97
    %v112 = vpack.c.b16 %v100, %v99
    %v113 = vpack.c.b16 %v102, %v101
    %v114 = vpack.c.b16 %v104, %v103
    %v115 = vpack.c.b16 %v106, %v105
    %v116 = vpack.c.b16 %v108, %v107
    %v121 = vunpack.c.l.b16 %v67
    %v122 = vunpack.c.l.b16 %v68
    %v123 = vunpack.c.l.b16 %v69
    %v124 = vunpack.c.l.b16 %v70
    %v125 = vpack.c.b16 %v122, %v121
    %v126 = vpack.c.b16 %v124, %v123
    %vm129 = vcmask 261120
    %v131 = vsel %vm129, %v109, 0
    %v134 = vsel %vm129, %v110, 0
    %v137 = vsel %vm129, %v111, 0
    %v140 = vsel %vm129, %v112, 0
    %v143 = vsel %vm129, %v113, 0
    %v146 = vsel %vm129, %v114, 0
    %v149 = vsel %vm129, %v115, 0
    %v152 = vsel %vm129, %v116, 0
    %154 = vmatprep.subr.bf16.mxu0 0
    %155 = vmatpush1.bf16.msra.mxu0 %v125
    %156 = vmatprep.subr.bf16.mxu0 0
    %157 = vmatpush1.bf16.msra.mxu0 %v126
    %158 = vmatprep.subr.bf16.mxu0 0
    %159 = vmatpush1.bf16.msra.mxu0 0
    %160 = vmatprep.subr.bf16.mxu0 0
    %161 = vmatpush1.bf16.msra.mxu0 0
    %162 = vmatprep.subr.bf16.mxu0 0
    %163 = vmatpush1.bf16.msra.mxu0 0
    %164 = vmatprep.subr.bf16.mxu0 0
    %165 = vmatpush1.bf16.msra.mxu0 0
    %166 = vmatprep.subr.bf16.mxu0 0
    %167 = vmatpush1.bf16.msra.mxu0 0
    %168 = vmatprep.subr.bf16.mxu0 0
    %169 = vmatpush1.bf16.msra.mxu0 0
    %170 = vmatprep.subr.bf16.mxu0 0
    %171 = vmatpush1.bf16.msra.mxu0 0
    %172 = vmatprep.subr.bf16.mxu0 0
    %173 = vmatpush1.bf16.msra.mxu0 0
    %174 = vmatprep.subr.bf16.mxu0 0
    %175 = vmatpush1.bf16.msra.mxu0 0
    %176 = vmatprep.subr.bf16.mxu0 0
    %177 = vmatpush1.bf16.msra.mxu0 0
    %178 = vmatprep.subr.bf16.mxu0 0
    %179 = vmatpush1.bf16.msra.mxu0 0
    %180 = vmatprep.subr.bf16.mxu0 0
    %181 = vmatpush1.bf16.msra.mxu0 0
    %182 = vmatprep.subr.bf16.mxu0 0
    %183 = vmatpush1.bf16.msra.mxu0 0
    %184 = vmatprep.subr.bf16.mxu0 0
    %185 = vmatpush1.bf16.msra.mxu0 0
    %186 = vmatprep.mubr.bf16.mxu0 0
    %187 = vmatmul.mubr.bf16.gmra.mrb[0].mxu0 %v131
    %v188 = vpop.f32.mrb[0].mxu0
    %v189 = vadd.f32 %v76, %v188
    %v190 = vpop.f32.mrb[0].mxu0
    %v191 = vpop.f32.mrb[0].mxu0
    %v192 = vadd.f32 %v76, %v191
    %v193 = vpop.f32.mrb[0].mxu0
    %194 = vmatprep.mubr.bf16.mxu0 0
    %195 = vmatmul.mubr.bf16.gmra.mrb[0].mxu0 %v134
    %v196 = vpop.f32.mrb[0].mxu0
    %v197 = vadd.f32 %v76, %v196
    %v198 = vpop.f32.mrb[0].mxu0
    %v199 = vpop.f32.mrb[0].mxu0
    %v200 = vadd.f32 %v76, %v199
    %v201 = vpop.f32.mrb[0].mxu0
    %202 = vmatprep.mubr.bf16.mxu0 0
    %203 = vmatmul.mubr.bf16.gmra.mrb[0].mxu0 %v137
    %v204 = vpop.f32.mrb[0].mxu0
    %v205 = vadd.f32 %v76, %v204
    %v206 = vpop.f32.mrb[0].mxu0
    %v207 = vpop.f32.mrb[0].mxu0
    %v208 = vadd.f32 %v76, %v207
    %v209 = vpop.f32.mrb[0].mxu0
    %210 = vmatprep.mubr.bf16.mxu0 0
    %211 = vmatmul.mubr.bf16.gmra.mrb[0].mxu0 %v140
    %v212 = vpop.f32.mrb[0].mxu0
    %v213 = vadd.f32 %v76, %v212
    %v214 = vpop.f32.mrb[0].mxu0
    %v215 = vpop.f32.mrb[0].mxu0
    %v216 = vadd.f32 %v76, %v215
    %v217 = vpop.f32.mrb[0].mxu0
    %218 = vmatprep.mubr.bf16.mxu0 0
    %219 = vmatmul.mubr.bf16.gmra.mrb[0].mxu0 %v143
    %v220 = vpop.f32.mrb[0].mxu0
    %v221 = vadd.f32 %v76, %v220
    %v222 = vpop.f32.mrb[0].mxu0
    %v223 = vpop.f32.mrb[0].mxu0
    %v224 = vadd.f32 %v76, %v223
    %v225 = vpop.f32.mrb[0].mxu0
    %226 = vmatprep.mubr.bf16.mxu0 0
    %227 = vmatmul.mubr.bf16.gmra.mrb[0].mxu0 %v146
    %v228 = vpop.f32.mrb[0].mxu0
    %v229 = vadd.f32 %v76, %v228
    %v230 = vpop.f32.mrb[0].mxu0
    %v231 = vpop.f32.mrb[0].mxu0
    %v232 = vadd.f32 %v76, %v231
    %v233 = vpop.f32.mrb[0].mxu0
    %234 = vmatprep.mubr.bf16.mxu0 0
    %235 = vmatmul.mubr.bf16.gmra.mrb[0].mxu0 %v149
    %v236 = vpop.f32.mrb[0].mxu0
    %v237 = vadd.f32 %v76, %v236
    %v238 = vpop.f32.mrb[0].mxu0
    %v239 = vpop.f32.mrb[0].mxu0
    %v240 = vadd.f32 %v76, %v239
    %v241 = vpop.f32.mrb[0].mxu0
    %242 = vmatprep.mubr.bf16.mxu0 0
    %243 = vmatmul.mubr.bf16.gmra.mrb[0].mxu0 %v152
    %v244 = vpop.f32.mrb[0].mxu0
    %v245 = vadd.f32 %v76, %v244
    %v246 = vpop.f32.mrb[0].mxu0
    %v247 = vpop.f32.mrb[0].mxu0
    %v248 = vadd.f32 %v76, %v247
    %v249 = vpop.f32.mrb[0].mxu0
    %250 = vdwg.mxu0
    %v251 = vmax.f32 %v189, 0.0
    %v252 = vmax.f32 %v192, 0.0
    %v253 = vmax.f32 %v197, 0.0
    %v254 = vmax.f32 %v200, 0.0
    %v255 = vmax.f32 %v205, 0.0
    %v256 = vmax.f32 %v208, 0.0
    %v257 = vmax.f32 %v213, 0.0
    %v258 = vmax.f32 %v216, 0.0
    %v259 = vmax.f32 %v221, 0.0
    %v260 = vmax.f32 %v224, 0.0
    %v261 = vmax.f32 %v229, 0.0
    %v262 = vmax.f32 %v232, 0.0
    %v263 = vmax.f32 %v237, 0.0
    %v264 = vmax.f32 %v240, 0.0
    %v265 = vmax.f32 %v245, 0.0
    %v266 = vmax.f32 %v248, 0.0
    %v267 = vld [vmem:[%s3] sm:$0x1]
    %v268 = vunpack.c.l.bf16 %v267
    %v269 = vlaneseq
    %v270 = vshrl.u32 %v269, 7
    %v271 = vsub.s32 0, %v270
    %v272 = vrot.slane %v268, %v271
    %v273 = vmul.f32 %v251, %v272
    %v274 = vmul.f32 %v252, %v272
    %v275 = vmul.f32 %v253, %v272
    %v276 = vmul.f32 %v254, %v272
    %v277 = vmul.f32 %v255, %v272
    %v278 = vmul.f32 %v256, %v272
    %v279 = vmul.f32 %v257, %v272
    %v280 = vmul.f32 %v258, %v272
    %v281 = vmul.f32 %v259, %v272
    %v282 = vmul.f32 %v260, %v272
    %v283 = vmul.f32 %v261, %v272
    %v284 = vmul.f32 %v262, %v272
    %v285 = vmul.f32 %v263, %v272
    %v286 = vmul.f32 %v264, %v272
    %v287 = vmul.f32 %v265, %v272
    %v288 = vmul.f32 %v266, %v272
    %v289 = vsel %vm129, %v273, 0.0
    %290 = vadd.xlane.f32.xlu0 %v289
    %v291 = vpop.xlane.xlu0 %290
    %v292 = vsel %vm129, %v274, 0.0
    %293 = vadd.xlane.f32.xlu0 %v292
    %v294 = vpop.xlane.xlu0 %293
    %v295 = vsel %vm129, %v275, 0.0
    %296 = vadd.xlane.f32.xlu0 %v295
    %v297 = vpop.xlane.xlu0 %296
    %v298 = vsel %vm129, %v276, 0.0
    %299 = vadd.xlane.f32.xlu0 %v298
    %v300 = vpop.xlane.xlu0 %299
    %v301 = vsel %vm129, %v277, 0.0
    %302 = vadd.xlane.f32.xlu0 %v301
    %v303 = vpop.xlane.xlu0 %302
    %v304 = vsel %vm129, %v278, 0.0
    %305 = vadd.xlane.f32.xlu0 %v304
    %v306 = vpop.xlane.xlu0 %305
    %v307 = vsel %vm129, %v279, 0.0
    %308 = vadd.xlane.f32.xlu0 %v307
    %v309 = vpop.xlane.xlu0 %308
    %v310 = vsel %vm129, %v280, 0.0
    %311 = vadd.xlane.f32.xlu0 %v310
    %v312 = vpop.xlane.xlu0 %311
    %v313 = vsel %vm129, %v281, 0.0
    %314 = vadd.xlane.f32.xlu0 %v313
    %v315 = vpop.xlane.xlu0 %314
    %v316 = vsel %vm129, %v282, 0.0
    %317 = vadd.xlane.f32.xlu0 %v316
    %v318 = vpop.xlane.xlu0 %317
    %v319 = vsel %vm129, %v283, 0.0
    %320 = vadd.xlane.f32.xlu0 %v319
    %v321 = vpop.xlane.xlu0 %320
    %v322 = vsel %vm129, %v284, 0.0
    %323 = vadd.xlane.f32.xlu0 %v322
    %v324 = vpop.xlane.xlu0 %323
    %v325 = vsel %vm129, %v285, 0.0
    %326 = vadd.xlane.f32.xlu0 %v325
    %v327 = vpop.xlane.xlu0 %326
    %v328 = vsel %vm129, %v286, 0.0
    %329 = vadd.xlane.f32.xlu0 %v328
    %v330 = vpop.xlane.xlu0 %329
    %v331 = vsel %vm129, %v287, 0.0
    %332 = vadd.xlane.f32.xlu0 %v331
    %v333 = vpop.xlane.xlu0 %332
    %v334 = vsel %vm129, %v288, 0.0
    %335 = vadd.xlane.f32.xlu0 %v334
    %v336 = vpop.xlane.xlu0 %335
    %s337 = sld [smem:[#allocation2]]
    %v338 = vstv %s337
    %v339 = vadd.f32 %v291, %v338
    %v340 = vadd.f32 %v294, %v338
    %v341 = vadd.f32 %v297, %v338
    %v342 = vadd.f32 %v300, %v338
    %v343 = vadd.f32 %v303, %v338
    %v344 = vadd.f32 %v306, %v338
    %v345 = vadd.f32 %v309, %v338
    %v346 = vadd.f32 %v312, %v338
    %v347 = vadd.f32 %v315, %v338
    %v348 = vadd.f32 %v318, %v338
    %v349 = vadd.f32 %v321, %v338
    %v350 = vadd.f32 %v324, %v338
    %v351 = vadd.f32 %v327, %v338
    %v352 = vadd.f32 %v330, %v338
    %v353 = vadd.f32 %v333, %v338
    %v354 = vadd.f32 %v336, %v338
    %v355 = vpack.c.bf16 %v340, %v339
    %v356 = vpack.c.bf16 %v342, %v341
    %v357 = vpack.c.bf16 %v344, %v343
    %v358 = vpack.c.bf16 %v346, %v345
    %v359 = vpack.c.bf16 %v348, %v347
    %v360 = vpack.c.bf16 %v350, %v349
    %v361 = vpack.c.bf16 %v352, %v351
    %v362 = vpack.c.bf16 %v354, %v353
    %v371 = vlaneseq
    %v372 = vshrl.u32 %v371, 7
    %v373 = vsub.s32 0, %v372
    %v374 = vrot.slane %v355, %v373
    %v375 = vlaneseq
    %v376 = vshrl.u32 %v375, 7
    %v377 = vsub.s32 1, %v376
    %v378 = vrot.slane %v355, %v377
    %v379 = vlaneseq
    %v380 = vshrl.u32 %v379, 7
    %v381 = vsub.s32 2, %v380
    %v382 = vrot.slane %v355, %v381
    %v383 = vlaneseq
    %v384 = vshrl.u32 %v383, 7
    %v385 = vsub.s32 3, %v384
    %v386 = vrot.slane %v355, %v385
    %v387 = vlaneseq
    %v388 = vshrl.u32 %v387, 7
    %v389 = vsub.s32 4, %v388
    %v390 = vrot.slane %v355, %v389
    %v391 = vlaneseq
    %v392 = vshrl.u32 %v391, 7
    %v393 = vsub.s32 5, %v392
    %v394 = vrot.slane %v355, %v393
    %v395 = vlaneseq
    %v396 = vshrl.u32 %v395, 7
    %v397 = vsub.s32 6, %v396
    %v398 = vrot.slane %v355, %v397
    %v399 = vlaneseq
    %v400 = vshrl.u32 %v399, 7
    %v401 = vsub.s32 7, %v400
    %v402 = vrot.slane %v355, %v401
    %v403 = vlaneseq
    %v404 = vshrl.u32 %v403, 7
    %v405 = vsub.s32 0, %v404
    %v406 = vrot.slane %v356, %v405
    %v407 = vlaneseq
    %v408 = vshrl.u32 %v407, 7
    %v409 = vsub.s32 1, %v408
    %v410 = vrot.slane %v356, %v409
    %v411 = vlaneseq
    %v412 = vshrl.u32 %v411, 7
    %v413 = vsub.s32 2, %v412
    %v414 = vrot.slane %v356, %v413
    %v415 = vlaneseq
    %v416 = vshrl.u32 %v415, 7
    %v417 = vsub.s32 3, %v416
    %v418 = vrot.slane %v356, %v417
    %v419 = vlaneseq
    %v420 = vshrl.u32 %v419, 7
    %v421 = vsub.s32 4, %v420
    %v422 = vrot.slane %v356, %v421
    %v423 = vlaneseq
    %v424 = vshrl.u32 %v423, 7
    %v425 = vsub.s32 5, %v424
    %v426 = vrot.slane %v356, %v425
    %v427 = vlaneseq
    %v428 = vshrl.u32 %v427, 7
    %v429 = vsub.s32 6, %v428
    %v430 = vrot.slane %v356, %v429
    %v431 = vlaneseq
    %v432 = vshrl.u32 %v431, 7
    %v433 = vsub.s32 7, %v432
    %v434 = vrot.slane %v356, %v433
    %v435 = vlaneseq
    %v436 = vshrl.u32 %v435, 7
    %v437 = vsub.s32 0, %v436
    %v438 = vrot.slane %v357, %v437
    %v439 = vlaneseq
    %v440 = vshrl.u32 %v439, 7
    %v441 = vsub.s32 1, %v440
    %v442 = vrot.slane %v357, %v441
    %v443 = vlaneseq
    %v444 = vshrl.u32 %v443, 7
    %v445 = vsub.s32 2, %v444
    %v446 = vrot.slane %v357, %v445
    %v447 = vlaneseq
    %v448 = vshrl.u32 %v447, 7
    %v449 = vsub.s32 3, %v448
    %v450 = vrot.slane %v357, %v449
    %v451 = vlaneseq
    %v452 = vshrl.u32 %v451, 7
    %v453 = vsub.s32 4, %v452
    %v454 = vrot.slane %v357, %v453
    %v455 = vlaneseq
    %v456 = vshrl.u32 %v455, 7
    %v457 = vsub.s32 5, %v456
    %v458 = vrot.slane %v357, %v457
    %v459 = vlaneseq
    %v460 = vshrl.u32 %v459, 7
    %v461 = vsub.s32 6, %v460
    %v462 = vrot.slane %v357, %v461
    %v463 = vlaneseq
    %v464 = vshrl.u32 %v463, 7
    %v465 = vsub.s32 7, %v464
    %v466 = vrot.slane %v357, %v465
    %v467 = vlaneseq
    %v468 = vshrl.u32 %v467, 7
    %v469 = vsub.s32 0, %v468
    %v470 = vrot.slane %v358, %v469
    %v471 = vlaneseq
    %v472 = vshrl.u32 %v471, 7
    %v473 = vsub.s32 1, %v472
    %v474 = vrot.slane %v358, %v473
    %v475 = vlaneseq
    %v476 = vshrl.u32 %v475, 7
    %v477 = vsub.s32 2, %v476
    %v478 = vrot.slane %v358, %v477
    %v479 = vlaneseq
    %v480 = vshrl.u32 %v479, 7
    %v481 = vsub.s32 3, %v480
    %v482 = vrot.slane %v358, %v481
    %v483 = vlaneseq
    %v484 = vshrl.u32 %v483, 7
    %v485 = vsub.s32 4, %v484
    %v486 = vrot.slane %v358, %v485
    %v487 = vlaneseq
    %v488 = vshrl.u32 %v487, 7
    %v489 = vsub.s32 5, %v488
    %v490 = vrot.slane %v358, %v489
    %v491 = vlaneseq
    %v492 = vshrl.u32 %v491, 7
    %v493 = vsub.s32 6, %v492
    %v494 = vrot.slane %v358, %v493
    %v495 = vlaneseq
    %v496 = vshrl.u32 %v495, 7
    %v497 = vsub.s32 7, %v496
    %v498 = vrot.slane %v358, %v497
    %v499 = vlaneseq
    %v500 = vshrl.u32 %v499, 7
    %v501 = vsub.s32 0, %v500
    %v502 = vrot.slane %v359, %v501
    %v503 = vlaneseq
    %v504 = vshrl.u32 %v503, 7
    %v505 = vsub.s32 1, %v504
    %v506 = vrot.slane %v359, %v505
    %v507 = vlaneseq
    %v508 = vshrl.u32 %v507, 7
    %v509 = vsub.s32 2, %v508
    %v510 = vrot.slane %v359, %v509
    %v511 = vlaneseq
    %v512 = vshrl.u32 %v511, 7
    %v513 = vsub.s32 3, %v512
    %v514 = vrot.slane %v359, %v513
    %v515 = vlaneseq
    %v516 = vshrl.u32 %v515, 7
    %v517 = vsub.s32 4, %v516
    %v518 = vrot.slane %v359, %v517
    %v519 = vlaneseq
    %v520 = vshrl.u32 %v519, 7
    %v521 = vsub.s32 5, %v520
    %v522 = vrot.slane %v359, %v521
    %v523 = vlaneseq
    %v524 = vshrl.u32 %v523, 7
    %v525 = vsub.s32 6, %v524
    %v526 = vrot.slane %v359, %v525
    %v527 = vlaneseq
    %v528 = vshrl.u32 %v527, 7
    %v529 = vsub.s32 7, %v528
    %v530 = vrot.slane %v359, %v529
    %v531 = vlaneseq
    %v532 = vshrl.u32 %v531, 7
    %v533 = vsub.s32 0, %v532
    %v534 = vrot.slane %v360, %v533
    %v535 = vlaneseq
    %v536 = vshrl.u32 %v535, 7
    %v537 = vsub.s32 1, %v536
    %v538 = vrot.slane %v360, %v537
    %v539 = vlaneseq
    %v540 = vshrl.u32 %v539, 7
    %v541 = vsub.s32 2, %v540
    %v542 = vrot.slane %v360, %v541
    %v543 = vlaneseq
    %v544 = vshrl.u32 %v543, 7
    %v545 = vsub.s32 3, %v544
    %v546 = vrot.slane %v360, %v545
    %v547 = vlaneseq
    %v548 = vshrl.u32 %v547, 7
    %v549 = vsub.s32 4, %v548
    %v550 = vrot.slane %v360, %v549
    %v551 = vlaneseq
    %v552 = vshrl.u32 %v551, 7
    %v553 = vsub.s32 5, %v552
    %v554 = vrot.slane %v360, %v553
    %v555 = vlaneseq
    %v556 = vshrl.u32 %v555, 7
    %v557 = vsub.s32 6, %v556
    %v558 = vrot.slane %v360, %v557
    %v559 = vlaneseq
    %v560 = vshrl.u32 %v559, 7
    %v561 = vsub.s32 7, %v560
    %v562 = vrot.slane %v360, %v561
    %v563 = vlaneseq
    %v564 = vshrl.u32 %v563, 7
    %v565 = vsub.s32 0, %v564
    %v566 = vrot.slane %v361, %v565
    %v567 = vlaneseq
    %v568 = vshrl.u32 %v567, 7
    %v569 = vsub.s32 1, %v568
    %v570 = vrot.slane %v361, %v569
    %v571 = vlaneseq
    %v572 = vshrl.u32 %v571, 7
    %v573 = vsub.s32 2, %v572
    %v574 = vrot.slane %v361, %v573
    %v575 = vlaneseq
    %v576 = vshrl.u32 %v575, 7
    %v577 = vsub.s32 3, %v576
    %v578 = vrot.slane %v361, %v577
    %v579 = vlaneseq
    %v580 = vshrl.u32 %v579, 7
    %v581 = vsub.s32 4, %v580
    %v582 = vrot.slane %v361, %v581
    %v583 = vlaneseq
    %v584 = vshrl.u32 %v583, 7
    %v585 = vsub.s32 5, %v584
    %v586 = vrot.slane %v361, %v585
    %v587 = vlaneseq
    %v588 = vshrl.u32 %v587, 7
    %v589 = vsub.s32 6, %v588
    %v590 = vrot.slane %v361, %v589
    %v591 = vlaneseq
    %v592 = vshrl.u32 %v591, 7
    %v593 = vsub.s32 7, %v592
    %v594 = vrot.slane %v361, %v593
    %v595 = vlaneseq
    %v596 = vshrl.u32 %v595, 7
    %v597 = vsub.s32 0, %v596
    %v598 = vrot.slane %v362, %v597
    %v599 = vlaneseq
    %v600 = vshrl.u32 %v599, 7
    %v601 = vsub.s32 1, %v600
    %v602 = vrot.slane %v362, %v601
    %v603 = vlaneseq
    %v604 = vshrl.u32 %v603, 7
    %v605 = vsub.s32 2, %v604
    %v606 = vrot.slane %v362, %v605
    %v607 = vlaneseq
    %v608 = vshrl.u32 %v607, 7
    %v609 = vsub.s32 3, %v608
    %v610 = vrot.slane %v362, %v609
    %v611 = vlaneseq
    %v612 = vshrl.u32 %v611, 7
    %v613 = vsub.s32 4, %v612
    %v614 = vrot.slane %v362, %v613
    %v615 = vlaneseq
    %v616 = vshrl.u32 %v615, 7
    %v617 = vsub.s32 5, %v616
    %v618 = vrot.slane %v362, %v617
    %v619 = vlaneseq
    %v620 = vshrl.u32 %v619, 7
    %v621 = vsub.s32 6, %v620
    %v622 = vrot.slane %v362, %v621
    %v623 = vlaneseq
    %v624 = vshrl.u32 %v623, 7
    %v625 = vsub.s32 7, %v624
    %v626 = vrot.slane %v362, %v625
    %v627 = vcombine.low %v374, %v382
    %v628 = vcombine.low %v378, %v386
    %v630 = vunpack.c.l.s4 1935823168
    %v631 = vunpack.c.0.s8 %v630
    %v632 = vlaneseq
    %v633 = vshrl.u32 %v632, 7
    %v634 = vsub.s32 %v631, %v633
    %v635 = vrot.slane %v627, %v634
    %v637 = vunpack.c.l.s4 1935823168
    %v638 = vunpack.c.0.s8 %v637
    %v639 = vlaneseq
    %v640 = vshrl.u32 %v639, 7
    %v641 = vsub.s32 %v638, %v640
    %v642 = vrot.slane %v628, %v641
    %v643 = vcombine.low %v635, %v642
    %v645 = vunpack.c.l.s4 1935823168
    %v646 = vunpack.c.0.s8 %v645
    %v647 = vlaneseq
    %v648 = vshrl.u32 %v647, 7
    %v649 = vsub.s32 %v646, %v648
    %v650 = vrot.slane %v643, %v649
    %v651 = vcombine.low %v390, %v398
    %v652 = vcombine.low %v394, %v402
    %v654 = vunpack.c.l.s4 1935823168
    %v655 = vunpack.c.0.s8 %v654
    %v656 = vlaneseq
    %v657 = vshrl.u32 %v656, 7
    %v658 = vsub.s32 %v655, %v657
    %v659 = vrot.slane %v651, %v658
    %v661 = vunpack.c.l.s4 1935823168
    %v662 = vunpack.c.0.s8 %v661
    %v663 = vlaneseq
    %v664 = vshrl.u32 %v663, 7
    %v665 = vsub.s32 %v662, %v664
    %v666 = vrot.slane %v652, %v665
    %v667 = vcombine.low %v659, %v666
    %v669 = vunpack.c.l.s4 1935823168
    %v670 = vunpack.c.0.s8 %v669
    %v671 = vlaneseq
    %v672 = vshrl.u32 %v671, 7
    %v673 = vsub.s32 %v670, %v672
    %v674 = vrot.slane %v667, %v673
    %v675 = vcombine.low %v406, %v414
    %v676 = vcombine.low %v410, %v418
    %v678 = vunpack.c.l.s4 1935823168
    %v679 = vunpack.c.0.s8 %v678
    %v680 = vlaneseq
    %v681 = vshrl.u32 %v680, 7
    %v682 = vsub.s32 %v679, %v681
    %v683 = vrot.slane %v675, %v682
    %v685 = vunpack.c.l.s4 1935823168
    %v686 = vunpack.c.0.s8 %v685
    %v687 = vlaneseq
    %v688 = vshrl.u32 %v687, 7
    %v689 = vsub.s32 %v686, %v688
    %v690 = vrot.slane %v676, %v689
    %v691 = vcombine.low %v683, %v690
    %v693 = vunpack.c.l.s4 1935823168
    %v694 = vunpack.c.0.s8 %v693
    %v695 = vlaneseq
    %v696 = vshrl.u32 %v695, 7
    %v697 = vsub.s32 %v694, %v696
    %v698 = vrot.slane %v691, %v697
    %v699 = vcombine.low %v422, %v430
    %v700 = vcombine.low %v426, %v434
    %v702 = vunpack.c.l.s4 1935823168
    %v703 = vunpack.c.0.s8 %v702
    %v704 = vlaneseq
    %v705 = vshrl.u32 %v704, 7
    %v706 = vsub.s32 %v703, %v705
    %v707 = vrot.slane %v699, %v706
    %v709 = vunpack.c.l.s4 1935823168
    %v710 = vunpack.c.0.s8 %v709
    %v711 = vlaneseq
    %v712 = vshrl.u32 %v711, 7
    %v713 = vsub.s32 %v710, %v712
    %v714 = vrot.slane %v700, %v713
    %v715 = vcombine.low %v707, %v714
    %v717 = vunpack.c.l.s4 1935823168
    %v718 = vunpack.c.0.s8 %v717
    %v719 = vlaneseq
    %v720 = vshrl.u32 %v719, 7
    %v721 = vsub.s32 %v718, %v720
    %v722 = vrot.slane %v715, %v721
    %v723 = vcombine.low %v438, %v446
    %v724 = vcombine.low %v442, %v450
    %v726 = vunpack.c.l.s4 1935823168
    %v727 = vunpack.c.0.s8 %v726
    %v728 = vlaneseq
    %v729 = vshrl.u32 %v728, 7
    %v730 = vsub.s32 %v727, %v729
    %v731 = vrot.slane %v723, %v730
    %v733 = vunpack.c.l.s4 1935823168
    %v734 = vunpack.c.0.s8 %v733
    %v735 = vlaneseq
    %v736 = vshrl.u32 %v735, 7
    %v737 = vsub.s32 %v734, %v736
    %v738 = vrot.slane %v724, %v737
    %v739 = vcombine.low %v731, %v738
    %v741 = vunpack.c.l.s4 1935823168
    %v742 = vunpack.c.0.s8 %v741
    %v743 = vlaneseq
    %v744 = vshrl.u32 %v743, 7
    %v745 = vsub.s32 %v742, %v744
    %v746 = vrot.slane %v739, %v745
    %v747 = vcombine.low %v454, %v462
    %v748 = vcombine.low %v458, %v466
    %v750 = vunpack.c.l.s4 1935823168
    %v751 = vunpack.c.0.s8 %v750
    %v752 = vlaneseq
    %v753 = vshrl.u32 %v752, 7
    %v754 = vsub.s32 %v751, %v753
    %v755 = vrot.slane %v747, %v754
    %v757 = vunpack.c.l.s4 1935823168
    %v758 = vunpack.c.0.s8 %v757
    %v759 = vlaneseq
    %v760 = vshrl.u32 %v759, 7
    %v761 = vsub.s32 %v758, %v760
    %v762 = vrot.slane %v748, %v761
    %v763 = vcombine.low %v755, %v762
    %v765 = vunpack.c.l.s4 1935823168
    %v766 = vunpack.c.0.s8 %v765
    %v767 = vlaneseq
    %v768 = vshrl.u32 %v767, 7
    %v769 = vsub.s32 %v766, %v768
    %v770 = vrot.slane %v763, %v769
    %v771 = vcombine.low %v470, %v478
    %v772 = vcombine.low %v474, %v482
    %v774 = vunpack.c.l.s4 1935823168
    %v775 = vunpack.c.0.s8 %v774
    %v776 = vlaneseq
    %v777 = vshrl.u32 %v776, 7
    %v778 = vsub.s32 %v775, %v777
    %v779 = vrot.slane %v771, %v778
    %v781 = vunpack.c.l.s4 1935823168
    %v782 = vunpack.c.0.s8 %v781
    %v783 = vlaneseq
    %v784 = vshrl.u32 %v783, 7
    %v785 = vsub.s32 %v782, %v784
    %v786 = vrot.slane %v772, %v785
    %v787 = vcombine.low %v779, %v786
    %v789 = vunpack.c.l.s4 1935823168
    %v790 = vunpack.c.0.s8 %v789
    %v791 = vlaneseq
    %v792 = vshrl.u32 %v791, 7
    %v793 = vsub.s32 %v790, %v792
    %v794 = vrot.slane %v787, %v793
    %v795 = vcombine.low %v486, %v494
    %v796 = vcombine.low %v490, %v498
    %v798 = vunpack.c.l.s4 1935823168
    %v799 = vunpack.c.0.s8 %v798
    %v800 = vlaneseq
    %v801 = vshrl.u32 %v800, 7
    %v802 = vsub.s32 %v799, %v801
    %v803 = vrot.slane %v795, %v802
    %v805 = vunpack.c.l.s4 1935823168
    %v806 = vunpack.c.0.s8 %v805
    %v807 = vlaneseq
    %v808 = vshrl.u32 %v807, 7
    %v809 = vsub.s32 %v806, %v808
    %v810 = vrot.slane %v796, %v809
    %v811 = vcombine.low %v803, %v810
    %v813 = vunpack.c.l.s4 1935823168
    %v814 = vunpack.c.0.s8 %v813
    %v815 = vlaneseq
    %v816 = vshrl.u32 %v815, 7
    %v817 = vsub.s32 %v814, %v816
    %v818 = vrot.slane %v811, %v817
    %v819 = vcombine.low %v502, %v510
    %v820 = vcombine.low %v506, %v514
    %v822 = vunpack.c.l.s4 1935823168
    %v823 = vunpack.c.0.s8 %v822
    %v824 = vlaneseq
    %v825 = vshrl.u32 %v824, 7
    %v826 = vsub.s32 %v823, %v825
    %v827 = vrot.slane %v819, %v826
    %v829 = vunpack.c.l.s4 1935823168
    %v830 = vunpack.c.0.s8 %v829
    %v831 = vlaneseq
    %v832 = vshrl.u32 %v831, 7
    %v833 = vsub.s32 %v830, %v832
    %v834 = vrot.slane %v820, %v833
    %v835 = vcombine.low %v827, %v834
    %v837 = vunpack.c.l.s4 1935823168
    %v838 = vunpack.c.0.s8 %v837
    %v839 = vlaneseq
    %v840 = vshrl.u32 %v839, 7
    %v841 = vsub.s32 %v838, %v840
    %v842 = vrot.slane %v835, %v841
    %v843 = vcombine.low %v518, %v526
    %v844 = vcombine.low %v522, %v530
    %v846 = vunpack.c.l.s4 1935823168
    %v847 = vunpack.c.0.s8 %v846
    %v848 = vlaneseq
    %v849 = vshrl.u32 %v848, 7
    %v850 = vsub.s32 %v847, %v849
    %v851 = vrot.slane %v843, %v850
    %v853 = vunpack.c.l.s4 1935823168
    %v854 = vunpack.c.0.s8 %v853
    %v855 = vlaneseq
    %v856 = vshrl.u32 %v855, 7
    %v857 = vsub.s32 %v854, %v856
    %v858 = vrot.slane %v844, %v857
    %v859 = vcombine.low %v851, %v858
    %v861 = vunpack.c.l.s4 1935823168
    %v862 = vunpack.c.0.s8 %v861
    %v863 = vlaneseq
    %v864 = vshrl.u32 %v863, 7
    %v865 = vsub.s32 %v862, %v864
    %v866 = vrot.slane %v859, %v865
    %v867 = vcombine.low %v534, %v542
    %v868 = vcombine.low %v538, %v546
    %v870 = vunpack.c.l.s4 1935823168
    %v871 = vunpack.c.0.s8 %v870
    %v872 = vlaneseq
    %v873 = vshrl.u32 %v872, 7
    %v874 = vsub.s32 %v871, %v873
    %v875 = vrot.slane %v867, %v874
    %v877 = vunpack.c.l.s4 1935823168
    %v878 = vunpack.c.0.s8 %v877
    %v879 = vlaneseq
    %v880 = vshrl.u32 %v879, 7
    %v881 = vsub.s32 %v878, %v880
    %v882 = vrot.slane %v868, %v881
    %v883 = vcombine.low %v875, %v882
    %v885 = vunpack.c.l.s4 1935823168
    %v886 = vunpack.c.0.s8 %v885
    %v887 = vlaneseq
    %v888 = vshrl.u32 %v887, 7
    %v889 = vsub.s32 %v886, %v888
    %v890 = vrot.slane %v883, %v889
    %v891 = vcombine.low %v550, %v558
    %v892 = vcombine.low %v554, %v562
    %v894 = vunpack.c.l.s4 1935823168
    %v895 = vunpack.c.0.s8 %v894
    %v896 = vlaneseq
    %v897 = vshrl.u32 %v896, 7
    %v898 = vsub.s32 %v895, %v897
    %v899 = vrot.slane %v891, %v898
    %v901 = vunpack.c.l.s4 1935823168
    %v902 = vunpack.c.0.s8 %v901
    %v903 = vlaneseq
    %v904 = vshrl.u32 %v903, 7
    %v905 = vsub.s32 %v902, %v904
    %v906 = vrot.slane %v892, %v905
    %v907 = vcombine.low %v899, %v906
    %v909 = vunpack.c.l.s4 1935823168
    %v910 = vunpack.c.0.s8 %v909
    %v911 = vlaneseq
    %v912 = vshrl.u32 %v911, 7
    %v913 = vsub.s32 %v910, %v912
    %v914 = vrot.slane %v907, %v913
    %v915 = vcombine.low %v566, %v574
    %v916 = vcombine.low %v570, %v578
    %v918 = vunpack.c.l.s4 1935823168
    %v919 = vunpack.c.0.s8 %v918
    %v920 = vlaneseq
    %v921 = vshrl.u32 %v920, 7
    %v922 = vsub.s32 %v919, %v921
    %v923 = vrot.slane %v915, %v922
    %v925 = vunpack.c.l.s4 1935823168
    %v926 = vunpack.c.0.s8 %v925
    %v927 = vlaneseq
    %v928 = vshrl.u32 %v927, 7
    %v929 = vsub.s32 %v926, %v928
    %v930 = vrot.slane %v916, %v929
    %v931 = vcombine.low %v923, %v930
    %v933 = vunpack.c.l.s4 1935823168
    %v934 = vunpack.c.0.s8 %v933
    %v935 = vlaneseq
    %v936 = vshrl.u32 %v935, 7
    %v937 = vsub.s32 %v934, %v936
    %v938 = vrot.slane %v931, %v937
    %v939 = vcombine.low %v582, %v590
    %v940 = vcombine.low %v586, %v594
    %v942 = vunpack.c.l.s4 1935823168
    %v943 = vunpack.c.0.s8 %v942
    %v944 = vlaneseq
    %v945 = vshrl.u32 %v944, 7
    %v946 = vsub.s32 %v943, %v945
    %v947 = vrot.slane %v939, %v946
    %v949 = vunpack.c.l.s4 1935823168
    %v950 = vunpack.c.0.s8 %v949
    %v951 = vlaneseq
    %v952 = vshrl.u32 %v951, 7
    %v953 = vsub.s32 %v950, %v952
    %v954 = vrot.slane %v940, %v953
    %v955 = vcombine.low %v947, %v954
    %v957 = vunpack.c.l.s4 1935823168
    %v958 = vunpack.c.0.s8 %v957
    %v959 = vlaneseq
    %v960 = vshrl.u32 %v959, 7
    %v961 = vsub.s32 %v958, %v960
    %v962 = vrot.slane %v955, %v961
    %v963 = vcombine.low %v598, %v606
    %v964 = vcombine.low %v602, %v610
    %v966 = vunpack.c.l.s4 1935823168
    %v967 = vunpack.c.0.s8 %v966
    %v968 = vlaneseq
    %v969 = vshrl.u32 %v968, 7
    %v970 = vsub.s32 %v967, %v969
    %v971 = vrot.slane %v963, %v970
    %v973 = vunpack.c.l.s4 1935823168
    %v974 = vunpack.c.0.s8 %v973
    %v975 = vlaneseq
    %v976 = vshrl.u32 %v975, 7
    %v977 = vsub.s32 %v974, %v976
    %v978 = vrot.slane %v964, %v977
    %v979 = vcombine.low %v971, %v978
    %v981 = vunpack.c.l.s4 1935823168
    %v982 = vunpack.c.0.s8 %v981
    %v983 = vlaneseq
    %v984 = vshrl.u32 %v983, 7
    %v985 = vsub.s32 %v982, %v984
    %v986 = vrot.slane %v979, %v985
    %v987 = vcombine.low %v614, %v622
    %v988 = vcombine.low %v618, %v626
    %v990 = vunpack.c.l.s4 1935823168
    %v991 = vunpack.c.0.s8 %v990
    %v992 = vlaneseq
    %v993 = vshrl.u32 %v992, 7
    %v994 = vsub.s32 %v991, %v993
    %v995 = vrot.slane %v987, %v994
    %v997 = vunpack.c.l.s4 1935823168
    %v998 = vunpack.c.0.s8 %v997
    %v999 = vlaneseq
    %v1000 = vshrl.u32 %v999, 7
    %v1001 = vsub.s32 %v998, %v1000
    %v1002 = vrot.slane %v988, %v1001
    %v1003 = vcombine.low %v995, %v1002
    %v1005 = vunpack.c.l.s4 1935823168
    %v1006 = vunpack.c.0.s8 %v1005
    %v1007 = vlaneseq
    %v1008 = vshrl.u32 %v1007, 7
    %v1009 = vsub.s32 %v1006, %v1008
    %v1010 = vrot.slane %v1003, %v1009
    %v1011 = vunpack.c.l.b16 %v650
    %v1012 = vunpack.c.l.b16 %v674
    %v1013 = vunpack.c.l.b16 %v698
    %v1014 = vunpack.c.l.b16 %v722
    %v1015 = vunpack.c.l.b16 %v746
    %v1016 = vunpack.c.l.b16 %v770
    %v1017 = vunpack.c.l.b16 %v794
    %v1018 = vunpack.c.l.b16 %v818
    %v1019 = vunpack.c.l.b16 %v842
    %v1020 = vunpack.c.l.b16 %v866
    %v1021 = vunpack.c.l.b16 %v890
    %v1022 = vunpack.c.l.b16 %v914
    %v1023 = vunpack.c.l.b16 %v938
    %v1024 = vunpack.c.l.b16 %v962
    %v1025 = vunpack.c.l.b16 %v986
    %v1026 = vunpack.c.l.b16 %v1010
    %1027 = vset.pattern.permute.xlu0 0
    %1028 = vperm.xlu0 %1027, %v1011
    %v1029 = vpop.permute.xlu0 %1028
    %1030 = vset.pattern.permute.xlu0 0
    %1031 = vperm.xlu0 %1030, %v1012
    %v1032 = vpop.permute.xlu0 %1031
    %1033 = vset.pattern.permute.xlu0 0
    %1034 = vperm.xlu0 %1033, %v1013
    %v1035 = vpop.permute.xlu0 %1034
    %1036 = vset.pattern.permute.xlu0 0
    %1037 = vperm.xlu0 %1036, %v1014
    %v1038 = vpop.permute.xlu0 %1037
    %1039 = vset.pattern.permute.xlu0 0
    %1040 = vperm.xlu0 %1039, %v1015
    %v1041 = vpop.permute.xlu0 %1040
    %1042 = vset.pattern.permute.xlu0 0
    %1043 = vperm.xlu0 %1042, %v1016
    %v1044 = vpop.permute.xlu0 %1043
    %1045 = vset.pattern.permute.xlu0 0
    %1046 = vperm.xlu0 %1045, %v1017
    %v1047 = vpop.permute.xlu0 %1046
    %1048 = vset.pattern.permute.xlu0 0
    %1049 = vperm.xlu0 %1048, %v1018
    %v1050 = vpop.permute.xlu0 %1049
    %1051 = vset.pattern.permute.xlu0 0
    %1052 = vperm.xlu0 %1051, %v1019
    %v1053 = vpop.permute.xlu0 %1052
    %1054 = vset.pattern.permute.xlu0 0
    %1055 = vperm.xlu0 %1054, %v1020
    %v1056 = vpop.permute.xlu0 %1055
    %1057 = vset.pattern.permute.xlu0 0
    %1058 = vperm.xlu0 %1057, %v1021
    %v1059 = vpop.permute.xlu0 %1058
    %1060 = vset.pattern.permute.xlu0 0
    %1061 = vperm.xlu0 %1060, %v1022
    %v1062 = vpop.permute.xlu0 %1061
    %1063 = vset.pattern.permute.xlu0 0
    %1064 = vperm.xlu0 %1063, %v1023
    %v1065 = vpop.permute.xlu0 %1064
    %1066 = vset.pattern.permute.xlu0 0
    %1067 = vperm.xlu0 %1066, %v1024
    %v1068 = vpop.permute.xlu0 %1067
    %1069 = vset.pattern.permute.xlu0 0
    %1070 = vperm.xlu0 %1069, %v1025
    %v1071 = vpop.permute.xlu0 %1070
    %1072 = vset.pattern.permute.xlu0 0
    %1073 = vperm.xlu0 %1072, %v1026
    %v1074 = vpop.permute.xlu0 %1073
    %v1075 = vlaneseq
    %v1076 = vand.u32 %v1075, 127
    %v1077 = vlaneseq
    %v1078 = vshrl.u32 %v1077, 7
    %v1079 = vsub.s32 %v1076, %v1078
    %v1080 = vrot.slane %v1029, %v1079
    %v1081 = vadd.s32 %v1076, 4294967288
    %v1082 = vlaneseq
    %v1083 = vshrl.u32 %v1082, 7
    %v1084 = vsub.s32 %v1081, %v1083
    %v1085 = vrot.slane %v1032, %v1084
    %vm1086 = vcmask 130112
    %v1087 = vsel %vm1086, %v1085, %v1080
    %v1088 = vadd.s32 %v1076, 4294967280
    %v1089 = vlaneseq
    %v1090 = vshrl.u32 %v1089, 7
    %v1091 = vsub.s32 %v1088, %v1090
    %v1092 = vrot.slane %v1035, %v1091
    %vm1093 = vcmask 195712
    %v1094 = vsel %vm1093, %v1092, %v1087
    %v1095 = vadd.s32 %v1076, 4294967272
    %v1096 = vlaneseq
    %v1097 = vshrl.u32 %v1096, 7
    %v1098 = vsub.s32 %v1095, %v1097
    %v1099 = vrot.slane %v1038, %v1098
    %vm1100 = vcmask 261312
    %v1101 = vsel %vm1100, %v1099, %v1094
    %v1102 = vadd.s32 %v1076, 4294967264
    %v1103 = vlaneseq
    %v1104 = vshrl.u32 %v1103, 7
    %v1105 = vsub.s32 %v1102, %v1104
    %v1106 = vrot.slane %v1041, %v1105
    %vm1107 = vcmask 326912
    %v1108 = vsel %vm1107, %v1106, %v1101
    %v1109 = vadd.s32 %v1076, 4294967256
    %v1110 = vlaneseq
    %v1111 = vshrl.u32 %v1110, 7
    %v1112 = vsub.s32 %v1109, %v1111
    %v1113 = vrot.slane %v1044, %v1112
    %vm1114 = vcmask 392512
    %v1115 = vsel %vm1114, %v1113, %v1108
    %v1116 = vadd.s32 %v1076, 4294967248
    %v1117 = vlaneseq
    %v1118 = vshrl.u32 %v1117, 7
    %v1119 = vsub.s32 %v1116, %v1118
    %v1120 = vrot.slane %v1047, %v1119
    %vm1121 = vcmask 458112
    %v1122 = vsel %vm1121, %v1120, %v1115
    %v1123 = vadd.s32 %v1076, 4294967240
    %v1124 = vlaneseq
    %v1125 = vshrl.u32 %v1124, 7
    %v1126 = vsub.s32 %v1123, %v1125
    %v1127 = vrot.slane %v1050, %v1126
    %vm1128 = vcmask 523712
    %v1129 = vsel %vm1128, %v1127, %v1122
    %v1130 = vadd.s32 %v1076, 4294967232
    %v1131 = vlaneseq
    %v1132 = vshrl.u32 %v1131, 7
    %v1133 = vsub.s32 %v1130, %v1132
    %v1134 = vrot.slane %v1053, %v1133
    %vm1135 = vcmask 589312
    %v1136 = vsel %vm1135, %v1134, %v1129
    %v1137 = vadd.s32 %v1076, 4294967224
    %v1138 = vlaneseq
    %v1139 = vshrl.u32 %v1138, 7
    %v1140 = vsub.s32 %v1137, %v1139
    %v1141 = vrot.slane %v1056, %v1140
    %vm1142 = vcmask 654912
    %v1143 = vsel %vm1142, %v1141, %v1136
    %v1144 = vadd.s32 %v1076, 4294967216
    %v1145 = vlaneseq
    %v1146 = vshrl.u32 %v1145, 7
    %v1147 = vsub.s32 %v1144, %v1146
    %v1148 = vrot.slane %v1059, %v1147
    %vm1149 = vcmask 720512
    %v1150 = vsel %vm1149, %v1148, %v1143
    %v1151 = vadd.s32 %v1076, 4294967208
    %v1152 = vlaneseq
    %v1153 = vshrl.u32 %v1152, 7
    %v1154 = vsub.s32 %v1151, %v1153
    %v1155 = vrot.slane %v1062, %v1154
    %vm1156 = vcmask 786112
    %v1157 = vsel %vm1156, %v1155, %v1150
    %v1158 = vadd.s32 %v1076, 4294967200
    %v1159 = vlaneseq
    %v1160 = vshrl.u32 %v1159, 7
    %v1161 = vsub.s32 %v1158, %v1160
    %v1162 = vrot.slane %v1065, %v1161
    %vm1163 = vcmask 851712
    %v1164 = vsel %vm1163, %v1162, %v1157
    %v1165 = vadd.s32 %v1076, 4294967192
    %v1166 = vlaneseq
    %v1167 = vshrl.u32 %v1166, 7
    %v1168 = vsub.s32 %v1165, %v1167
    %v1169 = vrot.slane %v1068, %v1168
    %vm1170 = vcmask 917312
    %v1171 = vsel %vm1170, %v1169, %v1164
    %v1172 = vadd.s32 %v1076, 4294967184
    %v1173 = vlaneseq
    %v1174 = vshrl.u32 %v1173, 7
    %v1175 = vsub.s32 %v1172, %v1174
    %v1176 = vrot.slane %v1071, %v1175
    %vm1177 = vcmask 982912
    %v1178 = vsel %vm1177, %v1176, %v1171
    %v1179 = vadd.s32 %v1076, 4294967176
    %v1180 = vlaneseq
    %v1181 = vshrl.u32 %v1180, 7
    %v1182 = vsub.s32 %v1179, %v1181
    %v1183 = vrot.slane %v1074, %v1182
    %vm1184 = vcmask 1048512
    %v1185 = vsel %vm1184, %v1183, %v1178
    %v1186 = vpack.c.b16 %v1185, %v1185
    %v1188 = vunpack.c.l.s4 1966171168
    %v1189 = vunpack.c.0.s8 %v1188
    %v1190 = vlaneseq
    %v1191 = vshrl.u32 %v1190, 7
    %v1192 = vsub.s32 %v1189, %v1191
    %v1193 = vrot.slane %v1186, %v1192
    %v1195 = vunpack.c.l.s4 1966171168
    %v1196 = vunpack.c.0.s8 %v1195
    %v1197 = vlaneseq
    %v1198 = vshrl.u32 %v1197, 7
    %v1199 = vsub.s32 %v1196, %v1198
    %v1200 = vrot.slane %v1193, %v1199
    %vm1202 = vcmask 1040384
    %vm1203 = vsmask.f32 256
    %vm1204 = vmand %vm1202, %vm1203
    %v1205 = vld [vmem:[#allocation8] sm:$0x1]
    %v1206 = vsel %vm1204, %v1200, %v1205
    %1207 = vst [vmem:[#allocation8] sm:$0x1] %v1206
    // Predicated region
    $region30: #{tpu_custom_call.1} parent=1 // pred_check
      _
    $region31: #{tpu_custom_call.1} parent=1 // pred_check_branch
      %1209 = sbr.rel (0) target = $region33
    $region32: #{tpu_custom_call.1} parent=1 // pred_region
      %s1211 = ssub.s32 16, 16
      %1212 = vsyncadd [#allocation5], %s1211
      %s1214 = sshll.u32 [#allocation8], 4
      %s1215 = int_to_ptr.vmem [resolvable:$true] %s1214
      %1217 = dma.vmem_to_hbm [thread:$0]  %s1215, 16, %s5, [#allocation5]
    $region33: #{tpu_custom_call.1} parent=1 // pred_fallthru
      _
    // Predicated region
    $region34: #{tpu_custom_call.1} parent=1 // pred_check
      _
    $region35: #{tpu_custom_call.1} parent=1 // pred_check_branch
      %1219 = sbr.rel (0) target = $region37
    $region36: #{tpu_custom_call.1} parent=1 // pred_region
      %1220 = dma.done [#allocation5], 16
    $region37: #{tpu_custom_call.1} parent=1 // pred_fallthru
      _
    %1221 = vsyncpa [#allocation4], 1
    %1222 = vsyncpa [#allocation7], 1
    %1223 = vsyncpa [#allocation5], 1

// kernel: tpu_custom_call.1
$region0: #{tpu_custom_call.1}
  #allocation0 [shape = 'u32[]', space=smem, size = 0x4, offset = 0x4, fixed_abs, tag = 'smem constant byte address 0x4 - core index']
  #allocation1 [shape = 'u32[144,128]{1,0:T(1,128)}', space=vmem, size = 0x12000, scoped, tag = 'internal scratch']
  #allocation2 [shape = 'f32[1,1]{1,0:T(1,128)S(6)}', space=smem, size = 0x200, scoped, tag = 'scoped memory for tpu_custom_call.1']
  %s0 = inlined_call_operand.hbm [shape: bf16[8,32], index: 0, kind: input, shape index: {}]
  %s1 = inlined_call_operand.hbm [shape: bf16[32,32], index: 1, kind: input, shape index: {}]
  %s2 = inlined_call_operand.vmem [shape: bf16[1,32], index: 2, kind: input, shape index: {}]
  %s3 = inlined_call_operand.vmem [shape: bf16[1,32], index: 3, kind: input, shape index: {}]
  %s4 = inlined_call_operand.<no memory space> [shape: f32[1,1], index: 4, kind: input, shape index: {}]
  %s5 = inlined_call_operand.hbm [shape: bf16[1,8], index: 5, kind: output, shape index: {}]
  %s6 = sld [smem:[#allocation0]]
  $region38: #{tpu_custom_call.1} parent=0
    _
  %s8 = ssub.s32 1, %s6
  %s9 = scalar_select 0, %s8, %s6
  %10 = sst [smem:[#allocation2]] %s4
  $region1: #{tpu_custom_call.1} parent=0
    #allocation3 [shape = 'u8[32768]{0}', space=vmem, size = 0x8000, scoped, tag = 'input window, operand 0, single buffered']
    #allocation4 [shape = 's32[1]{0}', space=sflag, size = 0x4, scoped, tag = 'scoped memory for tpu_custom_call.1']
    #allocation5 [shape = 's32[1]{0}', space=sflag, size = 0x4, scoped, tag = 'scoped memory for tpu_custom_call.1']
    #allocation6 [shape = 'u8[8192]{0}', space=vmem, size = 0x2000, scoped, tag = 'input window, operand 1, single buffered']
    #allocation7 [shape = 's32[1]{0}', space=sflag, size = 0x4, scoped, tag = 'scoped memory for tpu_custom_call.1']
    #allocation8 [shape = 'u8[512]{0}', space=vmem, size = 0x400, scoped, tag = 'output window, operand 0, single buffered']
    %11 = vsyncpa [#allocation4], 0
    %12 = vsyncpa [#allocation7], 0
    %13 = vsyncpa [#allocation5], 0
    // Predicated region
    $region2: #{tpu_custom_call.1} parent=1 // pred_check
      _
    $region3: #{tpu_custom_call.1} parent=1 // pred_check_branch
      %15 = sbr.rel (0) target = $region5
    $region4: #{tpu_custom_call.1} parent=1 // pred_region
      %s17 = ssub.s32 1024, 64
      %18 = vsyncadd [#allocation4], %s17
      %s19 = sshll.u32 [#allocation3], 4
      %s20 = int_to_ptr.vmem [resolvable:$true] %s19
      %25 = dma.hbm_to_vmem [thread:$0]  %s0, 64, %s20, [#allocation4], 64, 64, 4
    $region5: #{tpu_custom_call.1} parent=1 // pred_fallthru
      _
    // Predicated region
    $region6: #{tpu_custom_call.1} parent=1 // pred_check
      _
    $region7: #{tpu_custom_call.1} parent=1 // pred_check_branch
      %27 = sbr.rel (0) target = $region9
    $region8: #{tpu_custom_call.1} parent=1 // pred_region
      %s29 = ssub.s32 256, 256
      %30 = vsyncadd [#allocation7], %s29
      %s31 = sshll.u32 [#allocation6], 4
      %s32 = int_to_ptr.vmem [resolvable:$true] %s31
      %37 = dma.hbm_to_vmem [thread:$0]  %s1, 256, %s32, [#allocation7], 64, 64, 4
    $region9: #{tpu_custom_call.1} parent=1 // pred_fallthru
      _
    // Predicated region
    $region10: #{tpu_custom_call.1} parent=1 // pred_check
      _
    $region11: #{tpu_custom_call.1} parent=1 // pred_check_branch
      %39 = sbr.rel (0) target = $region13
    $region12: #{tpu_custom_call.1} parent=1 // pred_region
      _
    $region13: #{tpu_custom_call.1} parent=1 // pred_fallthru
      _
    // Predicated region
    $region14: #{tpu_custom_call.1} parent=1 // pred_check
      _
    $region15: #{tpu_custom_call.1} parent=1 // pred_check_branch
      %41 = sbr.rel (0) target = $region17
    $region16: #{tpu_custom_call.1} parent=1 // pred_region
      _
    $region17: #{tpu_custom_call.1} parent=1 // pred_fallthru
      _
    // Predicated region
    $region18: #{tpu_custom_call.1} parent=1 // pred_check
      _
    $region19: #{tpu_custom_call.1} parent=1 // pred_check_branch
      %43 = sbr.rel (0) target = $region21
    $region20: #{tpu_custom_call.1} parent=1 // pred_region
      _
    $region21: #{tpu_custom_call.1} parent=1 // pred_fallthru
      _
    // Predicated region
    $region22: #{tpu_custom_call.1} parent=1 // pred_check
      _
    $region23: #{tpu_custom_call.1} parent=1 // pred_check_branch
      %45 = sbr.rel (0) target = $region25
    $region24: #{tpu_custom_call.1} parent=1 // pred_region
      %46 = dma.done [#allocation4], 1024
    $region25: #{tpu_custom_call.1} parent=1 // pred_fallthru
      _
    // Predicated region
    $region26: #{tpu_custom_call.1} parent=1 // pred_check
      _
    $region27: #{tpu_custom_call.1} parent=1 // pred_check_branch
      %48 = sbr.rel (0) target = $region29
    $region28: #{tpu_custom_call.1} parent=1 // pred_region
      %49 = dma.done [#allocation7], 256
    $region29: #{tpu_custom_call.1} parent=1 // pred_fallthru
      _
    %v51 = vld [vmem:[#allocation3] sm:$0xf]
    %v52 = vld [vmem:[#allocation3 + $0x4] sm:$0xf]
    %v53 = vld [vmem:[#allocation3 + $0x8] sm:$0xf]
    %v54 = vld [vmem:[#allocation3 + $0xc] sm:$0xf]
    %v55 = vld [vmem:[#allocation3 + $0x10] sm:$0xf]
    %v56 = vld [vmem:[#allocation3 + $0x14] sm:$0xf]
    %v57 = vld [vmem:[#allocation3 + $0x18] sm:$0xf]
    %v58 = vld [vmem:[#allocation3 + $0x1c] sm:$0xf]
    %v59 = vld [vmem:[#allocation3 + $0x20] sm:$0xf]
    %v60 = vld [vmem:[#allocation3 + $0x24] sm:$0xf]
    %v61 = vld [vmem:[#allocation3 + $0x28] sm:$0xf]
    %v62 = vld [vmem:[#allocation3 + $0x2c] sm:$0xf]
    %v63 = vld [vmem:[#allocation3 + $0x30] sm:$0xf]
    %v64 = vld [vmem:[#allocation3 + $0x34] sm:$0xf]
    %v65 = vld [vmem:[#allocation3 + $0x38] sm:$0xf]
    %v66 = vld [vmem:[#allocation3 + $0x3c] sm:$0xf]
    %v67 = vld [vmem:[#allocation6] sm:$0xf]
    %v68 = vld [vmem:[#allocation6 + $0x4] sm:$0xf]
    %v69 = vld [vmem:[#allocation6 + $0x8] sm:$0xf]
    %v70 = vld [vmem:[#allocation6 + $0xc] sm:$0xf]
    %v71 = vld [vmem:[%s2] sm:$0x1]
    %v72 = vunpack.c.l.bf16 %v71
    %v73 = vlaneseq
    %v74 = vshrl.u32 %v73, 7
    %v75 = vsub.s32 0, %v74
    %v76 = vrot.slane %v72, %v75
    %v93 = vunpack.c.l.b16 %v51
    %v94 = vunpack.c.l.b16 %v52
    %v95 = vunpack.c.l.b16 %v53
    %v96 = vunpack.c.l.b16 %v54
    %v97 = vunpack.c.l.b16 %v55
    %v98 = vunpack.c.l.b16 %v56
    %v99 = vunpack.c.l.b16 %v57
    %v100 = vunpack.c.l.b16 %v58
    %v101 = vunpack.c.l.b16 %v59
    %v102 = vunpack.c.l.b16 %v60
    %v103 = vunpack.c.l.b16 %v61
    %v104 = vunpack.c.l.b16 %v62
    %v105 = vunpack.c.l.b16 %v63
    %v106 = vunpack.c.l.b16 %v64
    %v107 = vunpack.c.l.b16 %v65
    %v108 = vunpack.c.l.b16 %v66
    %v109 = vpack.c.b16 %v94, %v93
    %v110 = vpack.c.b16 %v96, %v95
    %v111 = vpack.c.b16 %v98, %v97
    %v112 = vpack.c.b16 %v100, %v99
    %v113 = vpack.c.b16 %v102, %v101
    %v114 = vpack.c.b16 %v104, %v103
    %v115 = vpack.c.b16 %v106, %v105
    %v116 = vpack.c.b16 %v108, %v107
    %v121 = vunpack.c.l.b16 %v67
    %v122 = vunpack.c.l.b16 %v68
    %v123 = vunpack.c.l.b16 %v69
    %v124 = vunpack.c.l.b16 %v70
    %v125 = vpack.c.b16 %v122, %v121
    %v126 = vpack.c.b16 %v124, %v123
    %vm129 = vcmask 261120
    %v131 = vsel %vm129, %v109, 0
    %v134 = vsel %vm129, %v110, 0
    %v137 = vsel %vm129, %v111, 0
    %v140 = vsel %vm129, %v112, 0
    %v143 = vsel %vm129, %v113, 0
    %v146 = vsel %vm129, %v114, 0
    %v149 = vsel %vm129, %v115, 0
    %v152 = vsel %vm129, %v116, 0
    %154 = vmatprep.subr.bf16.mxu0 0
    %155 = vmatpush1.bf16.msra.mxu0 %v125
    %156 = vmatprep.subr.bf16.mxu0 0
    %157 = vmatpush1.bf16.msra.mxu0 %v126
    %158 = vmatprep.subr.bf16.mxu0 0
    %159 = vmatpush1.bf16.msra.mxu0 0
    %160 = vmatprep.subr.bf16.mxu0 0
    %161 = vmatpush1.bf16.msra.mxu0 0
    %162 = vmatprep.subr.bf16.mxu0 0
    %163 = vmatpush1.bf16.msra.mxu0 0
    %164 = vmatprep.subr.bf16.mxu0 0
    %165 = vmatpush1.bf16.msra.mxu0 0
    %166 = vmatprep.subr.bf16.mxu0 0
    %167 = vmatpush1.bf16.msra.mxu0 0
    %168 = vmatprep.subr.bf16.mxu0 0
    %169 = vmatpush1.bf16.msra.mxu0 0
    %170 = vmatprep.subr.bf16.mxu0 0
    %171 = vmatpush1.bf16.msra.mxu0 0
    %172 = vmatprep.subr.bf16.mxu0 0
    %173 = vmatpush1.bf16.msra.mxu0 0
    %174 = vmatprep.subr.bf16.mxu0 0
    %175 = vmatpush1.bf16.msra.mxu0 0
    %176 = vmatprep.subr.bf16.mxu0 0
    %177 = vmatpush1.bf16.msra.mxu0 0
    %178 = vmatprep.subr.bf16.mxu0 0
    %179 = vmatpush1.bf16.msra.mxu0 0
    %180 = vmatprep.subr.bf16.mxu0 0
    %181 = vmatpush1.bf16.msra.mxu0 0
    %182 = vmatprep.subr.bf16.mxu0 0
    %183 = vmatpush1.bf16.msra.mxu0 0
    %184 = vmatprep.subr.bf16.mxu0 0
    %185 = vmatpush1.bf16.msra.mxu0 0
    %186 = vmatprep.mubr.bf16.mxu0 0
    %187 = vmatmul.mubr.bf16.gmra.mrb[0].mxu0 %v131
    %v188 = vpop.f32.mrb[0].mxu0
    %v189 = vadd.f32 %v76, %v188
    %v190 = vpop.f32.mrb[0].mxu0
    %v191 = vpop.f32.mrb[0].mxu0
    %v192 = vadd.f32 %v76, %v191
    %v193 = vpop.f32.mrb[0].mxu0
    %194 = vmatprep.mubr.bf16.mxu0 0
    %195 = vmatmul.mubr.bf16.gmra.mrb[0].mxu0 %v134
    %v196 = vpop.f32.mrb[0].mxu0
    %v197 = vadd.f32 %v76, %v196
    %v198 = vpop.f32.mrb[0].mxu0
    %v199 = vpop.f32.mrb[0].mxu0
    %v200 = vadd.f32 %v76, %v199
    %v201 = vpop.f32.mrb[0].mxu0
    %202 = vmatprep.mubr.bf16.mxu0 0
    %203 = vmatmul.mubr.bf16.gmra.mrb[0].mxu0 %v137
    %v204 = vpop.f32.mrb[0].mxu0
    %v205 = vadd.f32 %v76, %v204
    %v206 = vpop.f32.mrb[0].mxu0
    %v207 = vpop.f32.mrb[0].mxu0
    %v208 = vadd.f32 %v76, %v207
    %v209 = vpop.f32.mrb[0].mxu0
    %210 = vmatprep.mubr.bf16.mxu0 0
    %211 = vmatmul.mubr.bf16.gmra.mrb[0].mxu0 %v140
    %v212 = vpop.f32.mrb[0].mxu0
    %v213 = vadd.f32 %v76, %v212
    %v214 = vpop.f32.mrb[0].mxu0
    %v215 = vpop.f32.mrb[0].mxu0
    %v216 = vadd.f32 %v76, %v215
    %v217 = vpop.f32.mrb[0].mxu0
    %218 = vmatprep.mubr.bf16.mxu0 0
    %219 = vmatmul.mubr.bf16.gmra.mrb[0].mxu0 %v143
    %v220 = vpop.f32.mrb[0].mxu0
    %v221 = vadd.f32 %v76, %v220
    %v222 = vpop.f32.mrb[0].mxu0
    %v223 = vpop.f32.mrb[0].mxu0
    %v224 = vadd.f32 %v76, %v223
    %v225 = vpop.f32.mrb[0].mxu0
    %226 = vmatprep.mubr.bf16.mxu0 0
    %227 = vmatmul.mubr.bf16.gmra.mrb[0].mxu0 %v146
    %v228 = vpop.f32.mrb[0].mxu0
    %v229 = vadd.f32 %v76, %v228
    %v230 = vpop.f32.mrb[0].mxu0
    %v231 = vpop.f32.mrb[0].mxu0
    %v232 = vadd.f32 %v76, %v231
    %v233 = vpop.f32.mrb[0].mxu0
    %234 = vmatprep.mubr.bf16.mxu0 0
    %235 = vmatmul.mubr.bf16.gmra.mrb[0].mxu0 %v149
    %v236 = vpop.f32.mrb[0].mxu0
    %v237 = vadd.f32 %v76, %v236
    %v238 = vpop.f32.mrb[0].mxu0
    %v239 = vpop.f32.mrb[0].mxu0
    %v240 = vadd.f32 %v76, %v239
    %v241 = vpop.f32.mrb[0].mxu0
    %242 = vmatprep.mubr.bf16.mxu0 0
    %243 = vmatmul.mubr.bf16.gmra.mrb[0].mxu0 %v152
    %v244 = vpop.f32.mrb[0].mxu0
    %v245 = vadd.f32 %v76, %v244
    %v246 = vpop.f32.mrb[0].mxu0
    %v247 = vpop.f32.mrb[0].mxu0
    %v248 = vadd.f32 %v76, %v247
    %v249 = vpop.f32.mrb[0].mxu0
    %250 = vdwg.mxu0
    %v251 = vmax.f32 %v189, 0.0
    %v252 = vmax.f32 %v192, 0.0
    %v253 = vmax.f32 %v197, 0.0
    %v254 = vmax.f32 %v200, 0.0
    %v255 = vmax.f32 %v205, 0.0
    %v256 = vmax.f32 %v208, 0.0
    %v257 = vmax.f32 %v213, 0.0
    %v258 = vmax.f32 %v216, 0.0
    %v259 = vmax.f32 %v221, 0.0
    %v260 = vmax.f32 %v224, 0.0
    %v261 = vmax.f32 %v229, 0.0
    %v262 = vmax.f32 %v232, 0.0
    %v263 = vmax.f32 %v237, 0.0
    %v264 = vmax.f32 %v240, 0.0
    %v265 = vmax.f32 %v245, 0.0
    %v266 = vmax.f32 %v248, 0.0
    %v267 = vld [vmem:[%s3] sm:$0x1]
    %v268 = vunpack.c.l.bf16 %v267
    %v269 = vlaneseq
    %v270 = vshrl.u32 %v269, 7
    %v271 = vsub.s32 0, %v270
    %v272 = vrot.slane %v268, %v271
    %v273 = vmul.f32 %v251, %v272
    %v274 = vmul.f32 %v252, %v272
    %v275 = vmul.f32 %v253, %v272
    %v276 = vmul.f32 %v254, %v272
    %v277 = vmul.f32 %v255, %v272
    %v278 = vmul.f32 %v256, %v272
    %v279 = vmul.f32 %v257, %v272
    %v280 = vmul.f32 %v258, %v272
    %v281 = vmul.f32 %v259, %v272
    %v282 = vmul.f32 %v260, %v272
    %v283 = vmul.f32 %v261, %v272
    %v284 = vmul.f32 %v262, %v272
    %v285 = vmul.f32 %v263, %v272
    %v286 = vmul.f32 %v264, %v272
    %v287 = vmul.f32 %v265, %v272
    %v288 = vmul.f32 %v266, %v272
    %v289 = vsel %vm129, %v273, 0.0
    %290 = vadd.xlane.f32.xlu0 %v289
    %v291 = vpop.xlane.xlu0 %290
    %v292 = vsel %vm129, %v274, 0.0
    %293 = vadd.xlane.f32.xlu0 %v292
    %v294 = vpop.xlane.xlu0 %293
    %v295 = vsel %vm129, %v275, 0.0
    %296 = vadd.xlane.f32.xlu0 %v295
    %v297 = vpop.xlane.xlu0 %296
    %v298 = vsel %vm129, %v276, 0.0
    %299 = vadd.xlane.f32.xlu0 %v298
    %v300 = vpop.xlane.xlu0 %299
    %v301 = vsel %vm129, %v277, 0.0
    %302 = vadd.xlane.f32.xlu0 %v301
    %v303 = vpop.xlane.xlu0 %302
    %v304 = vsel %vm129, %v278, 0.0
    %305 = vadd.xlane.f32.xlu0 %v304
    %v306 = vpop.xlane.xlu0 %305
    %v307 = vsel %vm129, %v279, 0.0
    %308 = vadd.xlane.f32.xlu0 %v307
    %v309 = vpop.xlane.xlu0 %308
    %v310 = vsel %vm129, %v280, 0.0
    %311 = vadd.xlane.f32.xlu0 %v310
    %v312 = vpop.xlane.xlu0 %311
    %v313 = vsel %vm129, %v281, 0.0
    %314 = vadd.xlane.f32.xlu0 %v313
    %v315 = vpop.xlane.xlu0 %314
    %v316 = vsel %vm129, %v282, 0.0
    %317 = vadd.xlane.f32.xlu0 %v316
    %v318 = vpop.xlane.xlu0 %317
    %v319 = vsel %vm129, %v283, 0.0
    %320 = vadd.xlane.f32.xlu0 %v319
    %v321 = vpop.xlane.xlu0 %320
    %v322 = vsel %vm129, %v284, 0.0
    %323 = vadd.xlane.f32.xlu0 %v322
    %v324 = vpop.xlane.xlu0 %323
    %v325 = vsel %vm129, %v285, 0.0
    %326 = vadd.xlane.f32.xlu0 %v325
    %v327 = vpop.xlane.xlu0 %326
    %v328 = vsel %vm129, %v286, 0.0
    %329 = vadd.xlane.f32.xlu0 %v328
    %v330 = vpop.xlane.xlu0 %329
    %v331 = vsel %vm129, %v287, 0.0
    %332 = vadd.xlane.f32.xlu0 %v331
    %v333 = vpop.xlane.xlu0 %332
    %v334 = vsel %vm129, %v288, 0.0
    %335 = vadd.xlane.f32.xlu0 %v334
    %v336 = vpop.xlane.xlu0 %335
    %s337 = sld [smem:[#allocation2]]
    %v338 = vstv %s337
    %v339 = vadd.f32 %v291, %v338
    %v340 = vadd.f32 %v294, %v338
    %v341 = vadd.f32 %v297, %v338
    %v342 = vadd.f32 %v300, %v338
    %v343 = vadd.f32 %v303, %v338
    %v344 = vadd.f32 %v306, %v338
    %v345 = vadd.f32 %v309, %v338
    %v346 = vadd.f32 %v312, %v338
    %v347 = vadd.f32 %v315, %v338
    %v348 = vadd.f32 %v318, %v338
    %v349 = vadd.f32 %v321, %v338
    %v350 = vadd.f32 %v324, %v338
    %v351 = vadd.f32 %v327, %v338
    %v352 = vadd.f32 %v330, %v338
    %v353 = vadd.f32 %v333, %v338
    %v354 = vadd.f32 %v336, %v338
    %v355 = vpack.c.bf16 %v340, %v339
    %v356 = vpack.c.bf16 %v342, %v341
    %v357 = vpack.c.bf16 %v344, %v343
    %v358 = vpack.c.bf16 %v346, %v345
    %v359 = vpack.c.bf16 %v348, %v347
    %v360 = vpack.c.bf16 %v350, %v349
    %v361 = vpack.c.bf16 %v352, %v351
    %v362 = vpack.c.bf16 %v354, %v353
    %v371 = vlaneseq
    %v372 = vshrl.u32 %v371, 7
    %v373 = vsub.s32 0, %v372
    %v374 = vrot.slane %v355, %v373
    %v375 = vlaneseq
    %v376 = vshrl.u32 %v375, 7
    %v377 = vsub.s32 1, %v376
    %v378 = vrot.slane %v355, %v377
    %v379 = vlaneseq
    %v380 = vshrl.u32 %v379, 7
    %v381 = vsub.s32 2, %v380
    %v382 = vrot.slane %v355, %v381
    %v383 = vlaneseq
    %v384 = vshrl.u32 %v383, 7
    %v385 = vsub.s32 3, %v384
    %v386 = vrot.slane %v355, %v385
    %v387 = vlaneseq
    %v388 = vshrl.u32 %v387, 7
    %v389 = vsub.s32 4, %v388
    %v390 = vrot.slane %v355, %v389
    %v391 = vlaneseq
    %v392 = vshrl.u32 %v391, 7
    %v393 = vsub.s32 5, %v392
    %v394 = vrot.slane %v355, %v393
    %v395 = vlaneseq
    %v396 = vshrl.u32 %v395, 7
    %v397 = vsub.s32 6, %v396
    %v398 = vrot.slane %v355, %v397
    %v399 = vlaneseq
    %v400 = vshrl.u32 %v399, 7
    %v401 = vsub.s32 7, %v400
    %v402 = vrot.slane %v355, %v401
    %v403 = vlaneseq
    %v404 = vshrl.u32 %v403, 7
    %v405 = vsub.s32 0, %v404
    %v406 = vrot.slane %v356, %v405
    %v407 = vlaneseq
    %v408 = vshrl.u32 %v407, 7
    %v409 = vsub.s32 1, %v408
    %v410 = vrot.slane %v356, %v409
    %v411 = vlaneseq
    %v412 = vshrl.u32 %v411, 7
    %v413 = vsub.s32 2, %v412
    %v414 = vrot.slane %v356, %v413
    %v415 = vlaneseq
    %v416 = vshrl.u32 %v415, 7
    %v417 = vsub.s32 3, %v416
    %v418 = vrot.slane %v356, %v417
    %v419 = vlaneseq
    %v420 = vshrl.u32 %v419, 7
    %v421 = vsub.s32 4, %v420
    %v422 = vrot.slane %v356, %v421
    %v423 = vlaneseq
    %v424 = vshrl.u32 %v423, 7
    %v425 = vsub.s32 5, %v424
    %v426 = vrot.slane %v356, %v425
    %v427 = vlaneseq
    %v428 = vshrl.u32 %v427, 7
    %v429 = vsub.s32 6, %v428
    %v430 = vrot.slane %v356, %v429
    %v431 = vlaneseq
    %v432 = vshrl.u32 %v431, 7
    %v433 = vsub.s32 7, %v432
    %v434 = vrot.slane %v356, %v433
    %v435 = vlaneseq
    %v436 = vshrl.u32 %v435, 7
    %v437 = vsub.s32 0, %v436
    %v438 = vrot.slane %v357, %v437
    %v439 = vlaneseq
    %v440 = vshrl.u32 %v439, 7
    %v441 = vsub.s32 1, %v440
    %v442 = vrot.slane %v357, %v441
    %v443 = vlaneseq
    %v444 = vshrl.u32 %v443, 7
    %v445 = vsub.s32 2, %v444
    %v446 = vrot.slane %v357, %v445
    %v447 = vlaneseq
    %v448 = vshrl.u32 %v447, 7
    %v449 = vsub.s32 3, %v448
    %v450 = vrot.slane %v357, %v449
    %v451 = vlaneseq
    %v452 = vshrl.u32 %v451, 7
    %v453 = vsub.s32 4, %v452
    %v454 = vrot.slane %v357, %v453
    %v455 = vlaneseq
    %v456 = vshrl.u32 %v455, 7
    %v457 = vsub.s32 5, %v456
    %v458 = vrot.slane %v357, %v457
    %v459 = vlaneseq
    %v460 = vshrl.u32 %v459, 7
    %v461 = vsub.s32 6, %v460
    %v462 = vrot.slane %v357, %v461
    %v463 = vlaneseq
    %v464 = vshrl.u32 %v463, 7
    %v465 = vsub.s32 7, %v464
    %v466 = vrot.slane %v357, %v465
    %v467 = vlaneseq
    %v468 = vshrl.u32 %v467, 7
    %v469 = vsub.s32 0, %v468
    %v470 = vrot.slane %v358, %v469
    %v471 = vlaneseq
    %v472 = vshrl.u32 %v471, 7
    %v473 = vsub.s32 1, %v472
    %v474 = vrot.slane %v358, %v473
    %v475 = vlaneseq
    %v476 = vshrl.u32 %v475, 7
    %v477 = vsub.s32 2, %v476
    %v478 = vrot.slane %v358, %v477
    %v479 = vlaneseq
    %v480 = vshrl.u32 %v479, 7
    %v481 = vsub.s32 3, %v480
    %v482 = vrot.slane %v358, %v481
    %v483 = vlaneseq
    %v484 = vshrl.u32 %v483, 7
    %v485 = vsub.s32 4, %v484
    %v486 = vrot.slane %v358, %v485
    %v487 = vlaneseq
    %v488 = vshrl.u32 %v487, 7
    %v489 = vsub.s32 5, %v488
    %v490 = vrot.slane %v358, %v489
    %v491 = vlaneseq
    %v492 = vshrl.u32 %v491, 7
    %v493 = vsub.s32 6, %v492
    %v494 = vrot.slane %v358, %v493
    %v495 = vlaneseq
    %v496 = vshrl.u32 %v495, 7
    %v497 = vsub.s32 7, %v496
    %v498 = vrot.slane %v358, %v497
    %v499 = vlaneseq
    %v500 = vshrl.u32 %v499, 7
    %v501 = vsub.s32 0, %v500
    %v502 = vrot.slane %v359, %v501
    %v503 = vlaneseq
    %v504 = vshrl.u32 %v503, 7
    %v505 = vsub.s32 1, %v504
    %v506 = vrot.slane %v359, %v505
    %v507 = vlaneseq
    %v508 = vshrl.u32 %v507, 7
    %v509 = vsub.s32 2, %v508
    %v510 = vrot.slane %v359, %v509
    %v511 = vlaneseq
    %v512 = vshrl.u32 %v511, 7
    %v513 = vsub.s32 3, %v512
    %v514 = vrot.slane %v359, %v513
    %v515 = vlaneseq
    %v516 = vshrl.u32 %v515, 7
    %v517 = vsub.s32 4, %v516
    %v518 = vrot.slane %v359, %v517
    %v519 = vlaneseq
    %v520 = vshrl.u32 %v519, 7
    %v521 = vsub.s32 5, %v520
    %v522 = vrot.slane %v359, %v521
    %v523 = vlaneseq
    %v524 = vshrl.u32 %v523, 7
    %v525 = vsub.s32 6, %v524
    %v526 = vrot.slane %v359, %v525
    %v527 = vlaneseq
    %v528 = vshrl.u32 %v527, 7
    %v529 = vsub.s32 7, %v528
    %v530 = vrot.slane %v359, %v529
    %v531 = vlaneseq
    %v532 = vshrl.u32 %v531, 7
    %v533 = vsub.s32 0, %v532
    %v534 = vrot.slane %v360, %v533
    %v535 = vlaneseq
    %v536 = vshrl.u32 %v535, 7
    %v537 = vsub.s32 1, %v536
    %v538 = vrot.slane %v360, %v537
    %v539 = vlaneseq
    %v540 = vshrl.u32 %v539, 7
    %v541 = vsub.s32 2, %v540
    %v542 = vrot.slane %v360, %v541
    %v543 = vlaneseq
    %v544 = vshrl.u32 %v543, 7
    %v545 = vsub.s32 3, %v544
    %v546 = vrot.slane %v360, %v545
    %v547 = vlaneseq
    %v548 = vshrl.u32 %v547, 7
    %v549 = vsub.s32 4, %v548
    %v550 = vrot.slane %v360, %v549
    %v551 = vlaneseq
    %v552 = vshrl.u32 %v551, 7
    %v553 = vsub.s32 5, %v552
    %v554 = vrot.slane %v360, %v553
    %v555 = vlaneseq
    %v556 = vshrl.u32 %v555, 7
    %v557 = vsub.s32 6, %v556
    %v558 = vrot.slane %v360, %v557
    %v559 = vlaneseq
    %v560 = vshrl.u32 %v559, 7
    %v561 = vsub.s32 7, %v560
    %v562 = vrot.slane %v360, %v561
    %v563 = vlaneseq
    %v564 = vshrl.u32 %v563, 7
    %v565 = vsub.s32 0, %v564
    %v566 = vrot.slane %v361, %v565
    %v567 = vlaneseq
    %v568 = vshrl.u32 %v567, 7
    %v569 = vsub.s32 1, %v568
    %v570 = vrot.slane %v361, %v569
    %v571 = vlaneseq
    %v572 = vshrl.u32 %v571, 7
    %v573 = vsub.s32 2, %v572
    %v574 = vrot.slane %v361, %v573
    %v575 = vlaneseq
    %v576 = vshrl.u32 %v575, 7
    %v577 = vsub.s32 3, %v576
    %v578 = vrot.slane %v361, %v577
    %v579 = vlaneseq
    %v580 = vshrl.u32 %v579, 7
    %v581 = vsub.s32 4, %v580
    %v582 = vrot.slane %v361, %v581
    %v583 = vlaneseq
    %v584 = vshrl.u32 %v583, 7
    %v585 = vsub.s32 5, %v584
    %v586 = vrot.slane %v361, %v585
    %v587 = vlaneseq
    %v588 = vshrl.u32 %v587, 7
    %v589 = vsub.s32 6, %v588
    %v590 = vrot.slane %v361, %v589
    %v591 = vlaneseq
    %v592 = vshrl.u32 %v591, 7
    %v593 = vsub.s32 7, %v592
    %v594 = vrot.slane %v361, %v593
    %v595 = vlaneseq
    %v596 = vshrl.u32 %v595, 7
    %v597 = vsub.s32 0, %v596
    %v598 = vrot.slane %v362, %v597
    %v599 = vlaneseq
    %v600 = vshrl.u32 %v599, 7
    %v601 = vsub.s32 1, %v600
    %v602 = vrot.slane %v362, %v601
    %v603 = vlaneseq
    %v604 = vshrl.u32 %v603, 7
    %v605 = vsub.s32 2, %v604
    %v606 = vrot.slane %v362, %v605
    %v607 = vlaneseq
    %v608 = vshrl.u32 %v607, 7
    %v609 = vsub.s32 3, %v608
    %v610 = vrot.slane %v362, %v609
    %v611 = vlaneseq
    %v612 = vshrl.u32 %v611, 7
    %v613 = vsub.s32 4, %v612
    %v614 = vrot.slane %v362, %v613
    %v615 = vlaneseq
    %v616 = vshrl.u32 %v615, 7
    %v617 = vsub.s32 5, %v616
    %v618 = vrot.slane %v362, %v617
    %v619 = vlaneseq
    %v620 = vshrl.u32 %v619, 7
    %v621 = vsub.s32 6, %v620
    %v622 = vrot.slane %v362, %v621
    %v623 = vlaneseq
    %v624 = vshrl.u32 %v623, 7
    %v625 = vsub.s32 7, %v624
    %v626 = vrot.slane %v362, %v625
    %v627 = vcombine.low %v374, %v382
    %v628 = vcombine.low %v378, %v386
    %v630 = vunpack.c.l.s4 1935823168
    %v631 = vunpack.c.0.s8 %v630
    %v632 = vlaneseq
    %v633 = vshrl.u32 %v632, 7
    %v634 = vsub.s32 %v631, %v633
    %v635 = vrot.slane %v627, %v634
    %v637 = vunpack.c.l.s4 1935823168
    %v638 = vunpack.c.0.s8 %v637
    %v639 = vlaneseq
    %v640 = vshrl.u32 %v639, 7
    %v641 = vsub.s32 %v638, %v640
    %v642 = vrot.slane %v628, %v641
    %v643 = vcombine.low %v635, %v642
    %v645 = vunpack.c.l.s4 1935823168
    %v646 = vunpack.c.0.s8 %v645
    %v647 = vlaneseq
    %v648 = vshrl.u32 %v647, 7
    %v649 = vsub.s32 %v646, %v648
    %v650 = vrot.slane %v643, %v649
    %v651 = vcombine.low %v390, %v398
    %v652 = vcombine.low %v394, %v402
    %v654 = vunpack.c.l.s4 1935823168
    %v655 = vunpack.c.0.s8 %v654
    %v656 = vlaneseq
    %v657 = vshrl.u32 %v656, 7
    %v658 = vsub.s32 %v655, %v657
    %v659 = vrot.slane %v651, %v658
    %v661 = vunpack.c.l.s4 1935823168
    %v662 = vunpack.c.0.s8 %v661
    %v663 = vlaneseq
    %v664 = vshrl.u32 %v663, 7
    %v665 = vsub.s32 %v662, %v664
    %v666 = vrot.slane %v652, %v665
    %v667 = vcombine.low %v659, %v666
    %v669 = vunpack.c.l.s4 1935823168
    %v670 = vunpack.c.0.s8 %v669
    %v671 = vlaneseq
    %v672 = vshrl.u32 %v671, 7
    %v673 = vsub.s32 %v670, %v672
    %v674 = vrot.slane %v667, %v673
    %v675 = vcombine.low %v406, %v414
    %v676 = vcombine.low %v410, %v418
    %v678 = vunpack.c.l.s4 1935823168
    %v679 = vunpack.c.0.s8 %v678
    %v680 = vlaneseq
    %v681 = vshrl.u32 %v680, 7
    %v682 = vsub.s32 %v679, %v681
    %v683 = vrot.slane %v675, %v682
    %v685 = vunpack.c.l.s4 1935823168
    %v686 = vunpack.c.0.s8 %v685
    %v687 = vlaneseq
    %v688 = vshrl.u32 %v687, 7
    %v689 = vsub.s32 %v686, %v688
    %v690 = vrot.slane %v676, %v689
    %v691 = vcombine.low %v683, %v690
    %v693 = vunpack.c.l.s4 1935823168
    %v694 = vunpack.c.0.s8 %v693
    %v695 = vlaneseq
    %v696 = vshrl.u32 %v695, 7
    %v697 = vsub.s32 %v694, %v696
    %v698 = vrot.slane %v691, %v697
    %v699 = vcombine.low %v422, %v430
    %v700 = vcombine.low %v426, %v434
    %v702 = vunpack.c.l.s4 1935823168
    %v703 = vunpack.c.0.s8 %v702
    %v704 = vlaneseq
    %v705 = vshrl.u32 %v704, 7
    %v706 = vsub.s32 %v703, %v705
    %v707 = vrot.slane %v699, %v706
    %v709 = vunpack.c.l.s4 1935823168
    %v710 = vunpack.c.0.s8 %v709
    %v711 = vlaneseq
    %v712 = vshrl.u32 %v711, 7
    %v713 = vsub.s32 %v710, %v712
    %v714 = vrot.slane %v700, %v713
    %v715 = vcombine.low %v707, %v714
    %v717 = vunpack.c.l.s4 1935823168
    %v718 = vunpack.c.0.s8 %v717
    %v719 = vlaneseq
    %v720 = vshrl.u32 %v719, 7
    %v721 = vsub.s32 %v718, %v720
    %v722 = vrot.slane %v715, %v721
    %v723 = vcombine.low %v438, %v446
    %v724 = vcombine.low %v442, %v450
    %v726 = vunpack.c.l.s4 1935823168
    %v727 = vunpack.c.0.s8 %v726
    %v728 = vlaneseq
    %v729 = vshrl.u32 %v728, 7
    %v730 = vsub.s32 %v727, %v729
    %v731 = vrot.slane %v723, %v730
    %v733 = vunpack.c.l.s4 1935823168
    %v734 = vunpack.c.0.s8 %v733
    %v735 = vlaneseq
    %v736 = vshrl.u32 %v735, 7
    %v737 = vsub.s32 %v734, %v736
    %v738 = vrot.slane %v724, %v737
    %v739 = vcombine.low %v731, %v738
    %v741 = vunpack.c.l.s4 1935823168
    %v742 = vunpack.c.0.s8 %v741
    %v743 = vlaneseq
    %v744 = vshrl.u32 %v743, 7
    %v745 = vsub.s32 %v742, %v744
    %v746 = vrot.slane %v739, %v745
    %v747 = vcombine.low %v454, %v462
    %v748 = vcombine.low %v458, %v466
    %v750 = vunpack.c.l.s4 1935823168
    %v751 = vunpack.c.0.s8 %v750
    %v752 = vlaneseq
    %v753 = vshrl.u32 %v752, 7
    %v754 = vsub.s32 %v751, %v753
    %v755 = vrot.slane %v747, %v754
    %v757 = vunpack.c.l.s4 1935823168
    %v758 = vunpack.c.0.s8 %v757
    %v759 = vlaneseq
    %v760 = vshrl.u32 %v759, 7
    %v761 = vsub.s32 %v758, %v760
    %v762 = vrot.slane %v748, %v761
    %v763 = vcombine.low %v755, %v762
    %v765 = vunpack.c.l.s4 1935823168
    %v766 = vunpack.c.0.s8 %v765
    %v767 = vlaneseq
    %v768 = vshrl.u32 %v767, 7
    %v769 = vsub.s32 %v766, %v768
    %v770 = vrot.slane %v763, %v769
    %v771 = vcombine.low %v470, %v478
    %v772 = vcombine.low %v474, %v482
    %v774 = vunpack.c.l.s4 1935823168
    %v775 = vunpack.c.0.s8 %v774
    %v776 = vlaneseq
    %v777 = vshrl.u32 %v776, 7
    %v778 = vsub.s32 %v775, %v777
    %v779 = vrot.slane %v771, %v778
    %v781 = vunpack.c.l.s4 1935823168
    %v782 = vunpack.c.0.s8 %v781
    %v783 = vlaneseq
    %v784 = vshrl.u32 %v783, 7
    %v785 = vsub.s32 %v782, %v784
    %v786 = vrot.slane %v772, %v785
    %v787 = vcombine.low %v779, %v786
    %v789 = vunpack.c.l.s4 1935823168
    %v790 = vunpack.c.0.s8 %v789
    %v791 = vlaneseq
    %v792 = vshrl.u32 %v791, 7
    %v793 = vsub.s32 %v790, %v792
    %v794 = vrot.slane %v787, %v793
    %v795 = vcombine.low %v486, %v494
    %v796 = vcombine.low %v490, %v498
    %v798 = vunpack.c.l.s4 1935823168
    %v799 = vunpack.c.0.s8 %v798
    %v800 = vlaneseq
    %v801 = vshrl.u32 %v800, 7
    %v802 = vsub.s32 %v799, %v801
    %v803 = vrot.slane %v795, %v802
    %v805 = vunpack.c.l.s4 1935823168
    %v806 = vunpack.c.0.s8 %v805
    %v807 = vlaneseq
    %v808 = vshrl.u32 %v807, 7
    %v809 = vsub.s32 %v806, %v808
    %v810 = vrot.slane %v796, %v809
    %v811 = vcombine.low %v803, %v810
    %v813 = vunpack.c.l.s4 1935823168
    %v814 = vunpack.c.0.s8 %v813
    %v815 = vlaneseq
    %v816 = vshrl.u32 %v815, 7
    %v817 = vsub.s32 %v814, %v816
    %v818 = vrot.slane %v811, %v817
    %v819 = vcombine.low %v502, %v510
    %v820 = vcombine.low %v506, %v514
    %v822 = vunpack.c.l.s4 1935823168
    %v823 = vunpack.c.0.s8 %v822
    %v824 = vlaneseq
    %v825 = vshrl.u32 %v824, 7
    %v826 = vsub.s32 %v823, %v825
    %v827 = vrot.slane %v819, %v826
    %v829 = vunpack.c.l.s4 1935823168
    %v830 = vunpack.c.0.s8 %v829
    %v831 = vlaneseq
    %v832 = vshrl.u32 %v831, 7
    %v833 = vsub.s32 %v830, %v832
    %v834 = vrot.slane %v820, %v833
    %v835 = vcombine.low %v827, %v834
    %v837 = vunpack.c.l.s4 1935823168
    %v838 = vunpack.c.0.s8 %v837
    %v839 = vlaneseq
    %v840 = vshrl.u32 %v839, 7
    %v841 = vsub.s32 %v838, %v840
    %v842 = vrot.slane %v835, %v841
    %v843 = vcombine.low %v518, %v526
    %v844 = vcombine.low %v522, %v530
    %v846 = vunpack.c.l.s4 1935823168
    %v847 = vunpack.c.0.s8 %v846
    %v848 = vlaneseq
    %v849 = vshrl.u32 %v848, 7
    %v850 = vsub.s32 %v847, %v849
    %v851 = vrot.slane %v843, %v850
    %v853 = vunpack.c.l.s4 1935823168
    %v854 = vunpack.c.0.s8 %v853
    %v855 = vlaneseq
    %v856 = vshrl.u32 %v855, 7
    %v857 = vsub.s32 %v854, %v856
    %v858 = vrot.slane %v844, %v857
    %v859 = vcombine.low %v851, %v858
    %v861 = vunpack.c.l.s4 1935823168
    %v862 = vunpack.c.0.s8 %v861
    %v863 = vlaneseq
    %v864 = vshrl.u32 %v863, 7
    %v865 = vsub.s32 %v862, %v864
    %v866 = vrot.slane %v859, %v865
    %v867 = vcombine.low %v534, %v542
    %v868 = vcombine.low %v538, %v546
    %v870 = vunpack.c.l.s4 1935823168
    %v871 = vunpack.c.0.s8 %v870
    %v872 = vlaneseq
    %v873 = vshrl.u32 %v872, 7
    %v874 = vsub.s32 %v871, %v873
    %v875 = vrot.slane %v867, %v874
    %v877 = vunpack.c.l.s4 1935823168
    %v878 = vunpack.c.0.s8 %v877
    %v879 = vlaneseq
    %v880 = vshrl.u32 %v879, 7
    %v881 = vsub.s32 %v878, %v880
    %v882 = vrot.slane %v868, %v881
    %v883 = vcombine.low %v875, %v882
    %v885 = vunpack.c.l.s4 1935823168
    %v886 = vunpack.c.0.s8 %v885
    %v887 = vlaneseq
    %v888 = vshrl.u32 %v887, 7
    %v889 = vsub.s32 %v886, %v888
    %v890 = vrot.slane %v883, %v889
    %v891 = vcombine.low %v550, %v558
    %v892 = vcombine.low %v554, %v562
    %v894 = vunpack.c.l.s4 1935823168
    %v895 = vunpack.c.0.s8 %v894
    %v896 = vlaneseq
    %v897 = vshrl.u32 %v896, 7
    %v898 = vsub.s32 %v895, %v897
    %v899 = vrot.slane %v891, %v898
    %v901 = vunpack.c.l.s4 1935823168
    %v902 = vunpack.c.0.s8 %v901
    %v903 = vlaneseq
    %v904 = vshrl.u32 %v903, 7
    %v905 = vsub.s32 %v902, %v904
    %v906 = vrot.slane %v892, %v905
    %v907 = vcombine.low %v899, %v906
    %v909 = vunpack.c.l.s4 1935823168
    %v910 = vunpack.c.0.s8 %v909
    %v911 = vlaneseq
    %v912 = vshrl.u32 %v911, 7
    %v913 = vsub.s32 %v910, %v912
    %v914 = vrot.slane %v907, %v913
    %v915 = vcombine.low %v566, %v574
    %v916 = vcombine.low %v570, %v578
    %v918 = vunpack.c.l.s4 1935823168
    %v919 = vunpack.c.0.s8 %v918
    %v920 = vlaneseq
    %v921 = vshrl.u32 %v920, 7
    %v922 = vsub.s32 %v919, %v921
    %v923 = vrot.slane %v915, %v922
    %v925 = vunpack.c.l.s4 1935823168
    %v926 = vunpack.c.0.s8 %v925
    %v927 = vlaneseq
    %v928 = vshrl.u32 %v927, 7
    %v929 = vsub.s32 %v926, %v928
    %v930 = vrot.slane %v916, %v929
    %v931 = vcombine.low %v923, %v930
    %v933 = vunpack.c.l.s4 1935823168
    %v934 = vunpack.c.0.s8 %v933
    %v935 = vlaneseq
    %v936 = vshrl.u32 %v935, 7
    %v937 = vsub.s32 %v934, %v936
    %v938 = vrot.slane %v931, %v937
    %v939 = vcombine.low %v582, %v590
    %v940 = vcombine.low %v586, %v594
    %v942 = vunpack.c.l.s4 1935823168
    %v943 = vunpack.c.0.s8 %v942
    %v944 = vlaneseq
    %v945 = vshrl.u32 %v944, 7
    %v946 = vsub.s32 %v943, %v945
    %v947 = vrot.slane %v939, %v946
    %v949 = vunpack.c.l.s4 1935823168
    %v950 = vunpack.c.0.s8 %v949
    %v951 = vlaneseq
    %v952 = vshrl.u32 %v951, 7
    %v953 = vsub.s32 %v950, %v952
    %v954 = vrot.slane %v940, %v953
    %v955 = vcombine.low %v947, %v954
    %v957 = vunpack.c.l.s4 1935823168
    %v958 = vunpack.c.0.s8 %v957
    %v959 = vlaneseq
    %v960 = vshrl.u32 %v959, 7
    %v961 = vsub.s32 %v958, %v960
    %v962 = vrot.slane %v955, %v961
    %v963 = vcombine.low %v598, %v606
    %v964 = vcombine.low %v602, %v610
    %v966 = vunpack.c.l.s4 1935823168
    %v967 = vunpack.c.0.s8 %v966
    %v968 = vlaneseq
    %v969 = vshrl.u32 %v968, 7
    %v970 = vsub.s32 %v967, %v969
    %v971 = vrot.slane %v963, %v970
    %v973 = vunpack.c.l.s4 1935823168
    %v974 = vunpack.c.0.s8 %v973
    %v975 = vlaneseq
    %v976 = vshrl.u32 %v975, 7
    %v977 = vsub.s32 %v974, %v976
    %v978 = vrot.slane %v964, %v977
    %v979 = vcombine.low %v971, %v978
    %v981 = vunpack.c.l.s4 1935823168
    %v982 = vunpack.c.0.s8 %v981
    %v983 = vlaneseq
    %v984 = vshrl.u32 %v983, 7
    %v985 = vsub.s32 %v982, %v984
    %v986 = vrot.slane %v979, %v985
    %v987 = vcombine.low %v614, %v622
    %v988 = vcombine.low %v618, %v626
    %v990 = vunpack.c.l.s4 1935823168
    %v991 = vunpack.c.0.s8 %v990
    %v992 = vlaneseq
    %v993 = vshrl.u32 %v992, 7
    %v994 = vsub.s32 %v991, %v993
    %v995 = vrot.slane %v987, %v994
    %v997 = vunpack.c.l.s4 1935823168
    %v998 = vunpack.c.0.s8 %v997
    %v999 = vlaneseq
    %v1000 = vshrl.u32 %v999, 7
    %v1001 = vsub.s32 %v998, %v1000
    %v1002 = vrot.slane %v988, %v1001
    %v1003 = vcombine.low %v995, %v1002
    %v1005 = vunpack.c.l.s4 1935823168
    %v1006 = vunpack.c.0.s8 %v1005
    %v1007 = vlaneseq
    %v1008 = vshrl.u32 %v1007, 7
    %v1009 = vsub.s32 %v1006, %v1008
    %v1010 = vrot.slane %v1003, %v1009
    %v1011 = vunpack.c.l.b16 %v650
    %v1012 = vunpack.c.l.b16 %v674
    %v1013 = vunpack.c.l.b16 %v698
    %v1014 = vunpack.c.l.b16 %v722
    %v1015 = vunpack.c.l.b16 %v746
    %v1016 = vunpack.c.l.b16 %v770
    %v1017 = vunpack.c.l.b16 %v794
    %v1018 = vunpack.c.l.b16 %v818
    %v1019 = vunpack.c.l.b16 %v842
    %v1020 = vunpack.c.l.b16 %v866
    %v1021 = vunpack.c.l.b16 %v890
    %v1022 = vunpack.c.l.b16 %v914
    %v1023 = vunpack.c.l.b16 %v938
    %v1024 = vunpack.c.l.b16 %v962
    %v1025 = vunpack.c.l.b16 %v986
    %v1026 = vunpack.c.l.b16 %v1010
    %1027 = vset.pattern.permute.xlu0 0
    %1028 = vperm.xlu0 %1027, %v1011
    %v1029 = vpop.permute.xlu0 %1028
    %1030 = vset.pattern.permute.xlu0 0
    %1031 = vperm.xlu0 %1030, %v1012
    %v1032 = vpop.permute.xlu0 %1031
    %1033 = vset.pattern.permute.xlu0 0
    %1034 = vperm.xlu0 %1033, %v1013
    %v1035 = vpop.permute.xlu0 %1034
    %1036 = vset.pattern.permute.xlu0 0
    %1037 = vperm.xlu0 %1036, %v1014
    %v1038 = vpop.permute.xlu0 %1037
    %1039 = vset.pattern.permute.xlu0 0
    %1040 = vperm.xlu0 %1039, %v1015
    %v1041 = vpop.permute.xlu0 %1040
    %1042 = vset.pattern.permute.xlu0 0
    %1043 = vperm.xlu0 %1042, %v1016
    %v1044 = vpop.permute.xlu0 %1043
    %1045 = vset.pattern.permute.xlu0 0
    %1046 = vperm.xlu0 %1045, %v1017
    %v1047 = vpop.permute.xlu0 %1046
    %1048 = vset.pattern.permute.xlu0 0
    %1049 = vperm.xlu0 %1048, %v1018
    %v1050 = vpop.permute.xlu0 %1049
    %1051 = vset.pattern.permute.xlu0 0
    %1052 = vperm.xlu0 %1051, %v1019
    %v1053 = vpop.permute.xlu0 %1052
    %1054 = vset.pattern.permute.xlu0 0
    %1055 = vperm.xlu0 %1054, %v1020
    %v1056 = vpop.permute.xlu0 %1055
    %1057 = vset.pattern.permute.xlu0 0
    %1058 = vperm.xlu0 %1057, %v1021
    %v1059 = vpop.permute.xlu0 %1058
    %1060 = vset.pattern.permute.xlu0 0
    %1061 = vperm.xlu0 %1060, %v1022
    %v1062 = vpop.permute.xlu0 %1061
    %1063 = vset.pattern.permute.xlu0 0
    %1064 = vperm.xlu0 %1063, %v1023
    %v1065 = vpop.permute.xlu0 %1064
    %1066 = vset.pattern.permute.xlu0 0
    %1067 = vperm.xlu0 %1066, %v1024
    %v1068 = vpop.permute.xlu0 %1067
    %1069 = vset.pattern.permute.xlu0 0
    %1070 = vperm.xlu0 %1069, %v1025
    %v1071 = vpop.permute.xlu0 %1070
    %1072 = vset.pattern.permute.xlu0 0
    %1073 = vperm.xlu0 %1072, %v1026
    %v1074 = vpop.permute.xlu0 %1073
    %v1075 = vlaneseq
    %v1076 = vand.u32 %v1075, 127
    %v1077 = vlaneseq
    %v1078 = vshrl.u32 %v1077, 7
    %v1079 = vsub.s32 %v1076, %v1078
    %v1080 = vrot.slane %v1029, %v1079
    %v1081 = vadd.s32 %v1076, 4294967288
    %v1082 = vlaneseq
    %v1083 = vshrl.u32 %v1082, 7
    %v1084 = vsub.s32 %v1081, %v1083
    %v1085 = vrot.slane %v1032, %v1084
    %vm1086 = vcmask 130112
    %v1087 = vsel %vm1086, %v1085, %v1080
    %v1088 = vadd.s32 %v1076, 4294967280
    %v1089 = vlaneseq
    %v1090 = vshrl.u32 %v1089, 7
    %v1091 = vsub.s32 %v1088, %v1090
    %v1092 = vrot.slane %v1035, %v1091
    %vm1093 = vcmask 195712
    %v1094 = vsel %vm1093, %v1092, %v1087
    %v1095 = vadd.s32 %v1076, 4294967272
    %v1096 = vlaneseq
    %v1097 = vshrl.u32 %v1096, 7
    %v1098 = vsub.s32 %v1095, %v1097
    %v1099 = vrot.slane %v1038, %v1098
    %vm1100 = vcmask 261312
    %v1101 = vsel %vm1100, %v1099, %v1094
    %v1102 = vadd.s32 %v1076, 4294967264
    %v1103 = vlaneseq
    %v1104 = vshrl.u32 %v1103, 7
    %v1105 = vsub.s32 %v1102, %v1104
    %v1106 = vrot.slane %v1041, %v1105
    %vm1107 = vcmask 326912
    %v1108 = vsel %vm1107, %v1106, %v1101
    %v1109 = vadd.s32 %v1076, 4294967256
    %v1110 = vlaneseq
    %v1111 = vshrl.u32 %v1110, 7
    %v1112 = vsub.s32 %v1109, %v1111
    %v1113 = vrot.slane %v1044, %v1112
    %vm1114 = vcmask 392512
    %v1115 = vsel %vm1114, %v1113, %v1108
    %v1116 = vadd.s32 %v1076, 4294967248
    %v1117 = vlaneseq
    %v1118 = vshrl.u32 %v1117, 7
    %v1119 = vsub.s32 %v1116, %v1118
    %v1120 = vrot.slane %v1047, %v1119
    %vm1121 = vcmask 458112
    %v1122 = vsel %vm1121, %v1120, %v1115
    %v1123 = vadd.s32 %v1076, 4294967240
    %v1124 = vlaneseq
    %v1125 = vshrl.u32 %v1124, 7
    %v1126 = vsub.s32 %v1123, %v1125
    %v1127 = vrot.slane %v1050, %v1126
    %vm1128 = vcmask 523712
    %v1129 = vsel %vm1128, %v1127, %v1122
    %v1130 = vadd.s32 %v1076, 4294967232
    %v1131 = vlaneseq
    %v1132 = vshrl.u32 %v1131, 7
    %v1133 = vsub.s32 %v1130, %v1132
    %v1134 = vrot.slane %v1053, %v1133
    %vm1135 = vcmask 589312
    %v1136 = vsel %vm1135, %v1134, %v1129
    %v1137 = vadd.s32 %v1076, 4294967224
    %v1138 = vlaneseq
    %v1139 = vshrl.u32 %v1138, 7
    %v1140 = vsub.s32 %v1137, %v1139
    %v1141 = vrot.slane %v1056, %v1140
    %vm1142 = vcmask 654912
    %v1143 = vsel %vm1142, %v1141, %v1136
    %v1144 = vadd.s32 %v1076, 4294967216
    %v1145 = vlaneseq
    %v1146 = vshrl.u32 %v1145, 7
    %v1147 = vsub.s32 %v1144, %v1146
    %v1148 = vrot.slane %v1059, %v1147
    %vm1149 = vcmask 720512
    %v1150 = vsel %vm1149, %v1148, %v1143
    %v1151 = vadd.s32 %v1076, 4294967208
    %v1152 = vlaneseq
    %v1153 = vshrl.u32 %v1152, 7
    %v1154 = vsub.s32 %v1151, %v1153
    %v1155 = vrot.slane %v1062, %v1154
    %vm1156 = vcmask 786112
    %v1157 = vsel %vm1156, %v1155, %v1150
    %v1158 = vadd.s32 %v1076, 4294967200
    %v1159 = vlaneseq
    %v1160 = vshrl.u32 %v1159, 7
    %v1161 = vsub.s32 %v1158, %v1160
    %v1162 = vrot.slane %v1065, %v1161
    %vm1163 = vcmask 851712
    %v1164 = vsel %vm1163, %v1162, %v1157
    %v1165 = vadd.s32 %v1076, 4294967192
    %v1166 = vlaneseq
    %v1167 = vshrl.u32 %v1166, 7
    %v1168 = vsub.s32 %v1165, %v1167
    %v1169 = vrot.slane %v1068, %v1168
    %vm1170 = vcmask 917312
    %v1171 = vsel %vm1170, %v1169, %v1164
    %v1172 = vadd.s32 %v1076, 4294967184
    %v1173 = vlaneseq
    %v1174 = vshrl.u32 %v1173, 7
    %v1175 = vsub.s32 %v1172, %v1174
    %v1176 = vrot.slane %v1071, %v1175
    %vm1177 = vcmask 982912
    %v1178 = vsel %vm1177, %v1176, %v1171
    %v1179 = vadd.s32 %v1076, 4294967176
    %v1180 = vlaneseq
    %v1181 = vshrl.u32 %v1180, 7
    %v1182 = vsub.s32 %v1179, %v1181
    %v1183 = vrot.slane %v1074, %v1182
    %vm1184 = vcmask 1048512
    %v1185 = vsel %vm1184, %v1183, %v1178
    %v1186 = vpack.c.b16 %v1185, %v1185
    %v1188 = vunpack.c.l.s4 1966171168
    %v1189 = vunpack.c.0.s8 %v1188
    %v1190 = vlaneseq
    %v1191 = vshrl.u32 %v1190, 7
    %v1192 = vsub.s32 %v1189, %v1191
    %v1193 = vrot.slane %v1186, %v1192
    %v1195 = vunpack.c.l.s4 1966171168
    %v1196 = vunpack.c.0.s8 %v1195
    %v1197 = vlaneseq
    %v1198 = vshrl.u32 %v1197, 7
    %v1199 = vsub.s32 %v1196, %v1198
    %v1200 = vrot.slane %v1193, %v1199
    %vm1202 = vcmask 1040384
    %vm1203 = vsmask.f32 256
    %vm1204 = vmand %vm1202, %vm1203
    %v1205 = vld [vmem:[#allocation8] sm:$0x1]
    %v1206 = vsel %vm1204, %v1200, %v1205
    %1207 = vst [vmem:[#allocation8] sm:$0x1] %v1206
    // Predicated region
    $region30: #{tpu_custom_call.1} parent=1 // pred_check
      _
    $region31: #{tpu_custom_call.1} parent=1 // pred_check_branch
      %1209 = sbr.rel (0) target = $region33
    $region32: #{tpu_custom_call.1} parent=1 // pred_region
      %s1211 = ssub.s32 16, 16
      %1212 = vsyncadd [#allocation5], %s1211
      %s1214 = sshll.u32 [#allocation8], 4
      %s1215 = int_to_ptr.vmem [resolvable:$true] %s1214
      %1217 = dma.vmem_to_hbm [thread:$0]  %s1215, 16, %s5, [#allocation5]
    $region33: #{tpu_custom_call.1} parent=1 // pred_fallthru
      _
    // Predicated region
    $region34: #{tpu_custom_call.1} parent=1 // pred_check
      _
    $region35: #{tpu_custom_call.1} parent=1 // pred_check_branch
      %1219 = sbr.rel (0) target = $region37
    $region36: #{tpu_custom_call.1} parent=1 // pred_region
      %1220 = dma.done [#allocation5], 16
    $region37: #{tpu_custom_call.1} parent=1 // pred_fallthru
      _
    %1221 = vsyncpa [#allocation4], 1
    %1222 = vsyncpa [#allocation7], 1
    %1223 = vsyncpa [#allocation5], 1

</llo_original>
